<compile_context>
chip_gen: v6e
topology: v6e:2x2x1
jax: 0.10.0
libtpu: 0.0.40
codegen_flags: <defaults>
</compile_context>

<pallas_src>
import jax
import jax.numpy as jnp
from jax.experimental import pallas as pl
from jax.experimental.pallas import tpu as pltpu


# --------------------------------------------------------------------------
# Pallas kernels (transposed layout: [features (sublanes), pairs/atoms (lanes)])
# --------------------------------------------------------------------------
def _pair_kernel(xiT_ref, xjT_ref, basisT_ref,
                 w1iT_ref, w1jT_ref, b1_ref, w2T_ref, b2_ref,
                 expand_ref, sel_ref, wiiT_ref,
                 i1T_ref):
    f32 = jnp.float32
    bf16 = jnp.bfloat16

    # PILayer MLP layer 1: h = tanh(w1_i^T @ p1[pair_i]^T + w1_j^T @ p1[pair_j]^T + b1)
    # (split-w1 form of tanh(concat(p1_i, p1_j) @ w1 + b1))
    h = jnp.tanh(
        jnp.dot(w1iT_ref[...], xiT_ref[...], preferred_element_type=f32)
        + jnp.dot(w1jT_ref[...], xjT_ref[...], preferred_element_type=f32)
        + b1_ref[...])                                              # [H, tp] f32

    # PILayer MLP layer 2 (tanh kept: FeedForward activates every layer).
    y = jnp.tanh(
        jnp.dot(w2T_ref[...], h.astype(bf16), preferred_element_type=f32)
        + b2_ref[...])                                              # [C*B, tp] f32

    # einsum('icb,ib->ic') without reshape/tile:
    #   expand [C*B, B] replicates basis across the C groups (MXU),
    #   sel    [C, C*B] sums each contiguous B-group (MXU).
    basis_exp = jnp.dot(expand_ref[...], basisT_ref[...],
                        preferred_element_type=f32)                 # [C*B, tp]
    prod = (y * basis_exp).astype(bf16)
    piT = jnp.dot(sel_ref[...], prod, preferred_element_type=f32)   # [C, tp]

    # ii FeedForward (single Linear, bias=False, tanh).
    i1T_ref[...] = jnp.tanh(
        jnp.dot(wiiT_ref[...], piT.astype(bf16),
                preferred_element_type=f32))                        # [C_ii, tp]


def _pp_kernel(pT_ref, wppT_ref, bpp_ref, oT_ref):
    # pp FeedForward (single Linear, bias=True, tanh), atoms on lanes.
    oT_ref[...] = jnp.tanh(
        jnp.dot(wppT_ref[...], pT_ref[...].astype(jnp.bfloat16),
                preferred_element_type=jnp.float32)
        + bpp_ref[...])


# --------------------------------------------------------------------------
# Wrapper
# --------------------------------------------------------------------------
def _pad_rows(x, mult):
    pad = (-x.shape[0]) % mult
    if pad == 0:
        return x
    widths = [(0, pad)] + [(0, 0)] * (x.ndim - 1)
    return jnp.pad(x, widths)


def gcblock1_forward(p1, pair_i, pair_j, basis, params, *, tile_p=512):
    """GCBlock1 forward.  params = (w1, b1, w2, b2, wii, wpp, bpp), Linear
    weights stored as [in, out].  Returns ((p1_out,), (i1_out,))."""
    assert tile_p % 128 == 0, "tile_p must be a multiple of 128 (lane width)"
    w1, b1, w2, b2, wii, wpp, bpp = params
    n_atoms, C = p1.shape
    n_pairs, B = basis.shape
    H = w1.shape[1]
    CB = w2.shape[1]
    assert CB == C * B, "PILayer output width must be C * n_basis"
    C_ii = wii.shape[1]
    C_pp = wpp.shape[1]
    bf16, f32 = jnp.bfloat16, jnp.float32

    # ---- index plumbing (gather + transpose) in plain JAX --------------------
    # TODO(synk): the pair gather could be pulled in-kernel (scalar-prefetch /
    # DMA gather) to cut per-pair HBM bytes further; kept as XLA glue here.
    n_pad = pl.cdiv(n_pairs, tile_p) * tile_p
    pair_i_p = _pad_rows(pair_i, tile_p)               # pad with index 0 (valid)
    pair_j_p = _pad_rows(pair_j, tile_p)
    basisT = _pad_rows(basis, tile_p).T.astype(bf16)   # [B, n_pad]
    p1T_b = p1.T.astype(bf16)                          # [C, n_atoms]
    xiT = p1T_b[:, pair_i_p]                           # [C, n_pad]
    xjT = p1T_b[:, pair_j_p]                           # [C, n_pad]

    # ---- weights in transposed, bf16, MXU-friendly layout --------------------
    w1iT = w1[:C].T.astype(bf16)                       # [H, C]
    w1jT = w1[C:].T.astype(bf16)                       # [H, C]
    b1c = b1.reshape(H, 1).astype(f32)
    w2T = w2.T.astype(bf16)                            # [C*B, H]
    b2c = b2.reshape(CB, 1).astype(f32)
    wiiT = wii.T.astype(bf16)                          # [C_ii, C]
    wppT = wpp.T.astype(bf16)                          # [C_pp, C_ii]
    bppc = bpp.reshape(C_pp, 1).astype(f32)

    # 0/1 matrices turning einsum('icb,ib->ic') into two MXU matmuls.
    expand = (jnp.arange(CB)[:, None] % B == jnp.arange(B)[None, :]).astype(bf16)  # [CB, B]
    sel = (jnp.arange(CB)[None, :] // B == jnp.arange(C)[:, None]).astype(bf16)    # [C, CB]

    # ---- fused PILayer + ii-FeedForward kernel over pair tiles ---------------
    const = lambda shape: pl.BlockSpec(shape, lambda i: (0, 0))       # resident
    tile = lambda rows: pl.BlockSpec((rows, tile_p), lambda i: (0, i))

    flops = 2 * n_pad * (2 * H * C + CB * H + CB * B + C * CB + C_ii * C)
    transcendentals = n_pad * (H + CB + C_ii)
    in_bytes = sum(int(a.size) * a.dtype.itemsize for a in
                   (xiT, xjT, basisT, w1iT, w1jT, b1c, w2T, b2c, expand, sel, wiiT))
    cost = pl.CostEstimate(flops=int(flops),
                           transcendentals=int(transcendentals),
                           bytes_accessed=int(in_bytes + n_pad * C_ii * 4))

    i1T = pl.pallas_call(
        _pair_kernel,
        out_shape=jax.ShapeDtypeStruct((C_ii, n_pad), f32),
        grid_spec=pltpu.PrefetchScalarGridSpec(
            num_scalar_prefetch=0,
            grid=(n_pad // tile_p,),
            in_specs=[
                tile(C), tile(C), tile(B),
                const((H, C)), const((H, C)), const((H, 1)),
                const((CB, H)), const((CB, 1)),
                const((CB, B)), const((C, CB)), const((C_ii, C)),
            ],
            out_specs=tile(C_ii),                      # lane-dense store
        ),
        compiler_params=pltpu.CompilerParams(
            dimension_semantics=("parallel",)),
        cost_estimate=cost,
    )(xiT, xjT, basisT, w1iT, w1jT, b1c, w2T, b2c, expand, sel, wiiT)

    i1 = i1T[:, :n_pairs].T                            # [n_pairs, C_ii] f32

    # ---- IPLayer: scatter-add pairs onto atoms --------------------------------
    # TODO(synk): data-dependent scatter-add has no clean parallel Pallas form
    # (would need a serialized grid or DMA accumulation); left to XLA.
    p1_scat = jnp.zeros((n_atoms, C_ii), f32).at[pair_i].add(i1)

    # ---- pp FeedForward on atoms (small second kernel, atoms on lanes) --------
    tile_a = 128
    n_atoms_pad = pl.cdiv(n_atoms, tile_a) * tile_a
    p1sT = _pad_rows(p1_scat, tile_a).T                # [C_ii, n_atoms_pad] f32

    p1oT = pl.pallas_call(
        _pp_kernel,
        out_shape=jax.ShapeDtypeStruct((C_pp, n_atoms_pad), f32),
        grid_spec=pltpu.PrefetchScalarGridSpec(
            num_scalar_prefetch=0,
            grid=(n_atoms_pad // tile_a,),
            in_specs=[
                pl.BlockSpec((C_ii, tile_a), lambda i: (0, i)),
                pl.BlockSpec((C_pp, C_ii), lambda i: (0, 0)),
                pl.BlockSpec((C_pp, 1), lambda i: (0, 0)),
            ],
            out_specs=pl.BlockSpec((C_pp, tile_a), lambda i: (0, i)),
        ),
        compiler_params=pltpu.CompilerParams(
            dimension_semantics=("parallel",)),
    )(p1sT, wppT, bppc)

    p1_out = p1oT[:, :n_atoms].T[:, None, :]           # [n_atoms, 1, C_pp]
    i1_out = i1[:, None, :]                            # [n_pairs, 1, C_ii]
    return (p1_out,), (i1_out,)


# --------------------------------------------------------------------------
# Pure-JAX reference (same bf16-operand / f32-accumulate matmul discipline)
# --------------------------------------------------------------------------
def gcblock1_ref(p1, pair_i, pair_j, basis, params):
    w1, b1, w2, b2, wii, wpp, bpp = params
    bf = lambda a: a.astype(jnp.bfloat16)
    dot = lambda a, b: jnp.dot(bf(a), bf(b), preferred_element_type=jnp.float32)
    C = p1.shape[-1]
    B = basis.shape[-1]
    # PILayer
    x = jnp.concatenate([p1[pair_i], p1[pair_j]], axis=-1)
    h = jnp.tanh(dot(x, w1) + b1)
    y = jnp.tanh(dot(h, w2) + b2)
    prod = y.reshape(-1, C, B) * bf(basis).astype(jnp.float32)[:, None, :]
    pi = bf(prod).astype(jnp.float32).sum(-1)                     # [n_pairs, C]
    # ii FeedForward (no bias)
    i1 = jnp.tanh(dot(pi, wii))
    # IPLayer (index_add)
    p1s = jnp.zeros((p1.shape[0], i1.shape[-1]), jnp.float32).at[pair_i].add(i1)
    # pp FeedForward
    p1o = jnp.tanh(dot(p1s, wpp) + bpp)
    return (p1o[:, None, :],), (i1[:, None, :],)


if __name__ == "__main__":
    # Small shapes consistent with GCBlock1:
    #   pi_nodes = (C, H, C*B)  -> PILayer FeedForward(2C, H, C*B)
    #   ii_nodes = (C, C_ii)    -> FeedForward, bias=False
    #   pp_nodes = (C_ii, C_pp) -> FeedForward, bias=True
    n_atoms, n_chan, n_basis, hidden = 64, 16, 16, 32
    n_chan_ii, n_chan_pp = 16, 16
    n_pairs = 1000                      # deliberately NOT a multiple of the tile

    key = jax.random.PRNGKey(0)
    ks = jax.random.split(key, 11)
    p1 = jax.random.normal(ks[0], (n_atoms, n_chan), jnp.float32)
    pair_i = jax.random.randint(ks[1], (n_pairs,), 0, n_atoms, dtype=jnp.int32)
    pair_j = jax.random.randint(ks[2], (n_pairs,), 0, n_atoms, dtype=jnp.int32)
    basis = jax.random.normal(ks[3], (n_pairs, n_basis), jnp.float32)

    w1 = 0.2 * jax.random.normal(ks[4], (2 * n_chan, hidden), jnp.float32)
    b1 = 0.1 * jax.random.normal(ks[5], (hidden,), jnp.float32)
    w2 = 0.2 * jax.random.normal(ks[6], (hidden, n_chan * n_basis), jnp.float32)
    b2 = 0.1 * jax.random.normal(ks[7], (n_chan * n_basis,), jnp.float32)
    wii = 0.2 * jax.random.normal(ks[8], (n_chan, n_chan_ii), jnp.float32)
    wpp = 0.2 * jax.random.normal(ks[9], (n_chan_ii, n_chan_pp), jnp.float32)
    bpp = 0.1 * jax.random.normal(ks[10], (n_chan_pp,), jnp.float32)
    params = (w1, b1, w2, b2, wii, wpp, bpp)

    # tile_p=256 here so the small demo still has 4 grid steps (pipelining /
    # both v7x TensorCores); production-sized n_pairs should use 512-2048.
    (p1_out,), (i1_out,) = gcblock1_forward(p1, pair_i, pair_j, basis, params,
                                            tile_p=256)
    p1_out = jax.block_until_ready(p1_out)
    i1_out = jax.block_until_ready(i1_out)

    (p1_ref,), (i1_ref,) = gcblock1_ref(p1, pair_i, pair_j, basis, params)

    assert p1_out.shape == (n_atoms, 1, n_chan_pp), p1_out.shape
    assert i1_out.shape == (n_pairs, 1, n_chan_ii), i1_out.shape
    # bf16 MXU operands in both kernel and reference; tolerance covers bf16
    # rounding-boundary effects on intermediate activations.
    assert jnp.allclose(i1_out, i1_ref, atol=2e-2, rtol=2e-2), "i1 mismatch"
    assert jnp.allclose(p1_out, p1_ref, atol=2e-2, rtol=2e-2), "p1 mismatch"
    print("KERNEL_OK")
</pallas_src>

<mosaic_0001>
module attributes {stable_mosaic.version = 11 : i64} {
  func.func @_pair_kernel(%arg0: i32, %arg1: memref<16x256xbf16, #tpu.memory_space<vmem>>, %arg2: memref<16x256xbf16, #tpu.memory_space<vmem>>, %arg3: memref<16x256xbf16, #tpu.memory_space<vmem>>, %arg4: memref<32x16xbf16, #tpu.memory_space<vmem>>, %arg5: memref<32x16xbf16, #tpu.memory_space<vmem>>, %arg6: memref<32x1xf32, #tpu.memory_space<vmem>>, %arg7: memref<256x32xbf16, #tpu.memory_space<vmem>>, %arg8: memref<256x1xf32, #tpu.memory_space<vmem>>, %arg9: memref<256x16xbf16, #tpu.memory_space<vmem>>, %arg10: memref<16x256xbf16, #tpu.memory_space<vmem>>, %arg11: memref<16x16xbf16, #tpu.memory_space<vmem>>, %arg12: memref<16x256xf32, #tpu.memory_space<vmem>>) attributes {dimension_semantics = [#tpu.dimension_semantics<parallel>], iteration_bounds = array<i64: 4>, scalar_prefetch = 0 : i64, scratch_operands = 0 : i64, tpu.core_type = #tpu.core_type<tc>, window_params = [{transform_indices = @transform_0, window_bounds = array<i64: 16, 256>}, {transform_indices = @transform_1, window_bounds = array<i64: 16, 256>}, {transform_indices = @transform_2, window_bounds = array<i64: 16, 256>}, {pipeline_mode = #tpu.pipeline_mode<synchronous>, transform_indices = @transform_3, window_bounds = array<i64: 32, 16>}, {pipeline_mode = #tpu.pipeline_mode<synchronous>, transform_indices = @transform_4, window_bounds = array<i64: 32, 16>}, {pipeline_mode = #tpu.pipeline_mode<synchronous>, transform_indices = @transform_5, window_bounds = array<i64: 32, 1>}, {pipeline_mode = #tpu.pipeline_mode<synchronous>, transform_indices = @transform_6, window_bounds = array<i64: 256, 32>}, {pipeline_mode = #tpu.pipeline_mode<synchronous>, transform_indices = @transform_7, window_bounds = array<i64: 256, 1>}, {pipeline_mode = #tpu.pipeline_mode<synchronous>, transform_indices = @transform_8, window_bounds = array<i64: 256, 16>}, {pipeline_mode = #tpu.pipeline_mode<synchronous>, transform_indices = @transform_9, window_bounds = array<i64: 16, 256>}, {pipeline_mode = #tpu.pipeline_mode<synchronous>, transform_indices = @transform_10, window_bounds = array<i64: 16, 16>}, {transform_indices = @transform_11, window_bounds = array<i64: 16, 256>}]} {
    %c0 = arith.constant 0 : index
    %c0_0 = arith.constant 0 : index
    %0 = vector.load %arg4[%c0, %c0_0] : memref<32x16xbf16, #tpu.memory_space<vmem>>, vector<32x16xbf16>
    %c0_1 = arith.constant 0 : index
    %c0_2 = arith.constant 0 : index
    %1 = vector.load %arg1[%c0_1, %c0_2] : memref<16x256xbf16, #tpu.memory_space<vmem>>, vector<16x256xbf16>
    %cst = arith.constant dense<0.000000e+00> : vector<32x256xf32>
    %2 = tpu.matmul %0, %1, %cst {dimension_numbers = #tpu.dot_dimension_numbers<[1], [0], [0], [1], [0, 0, 1, 1], [], []>} : vector<32x16xbf16>, vector<16x256xbf16>, vector<32x256xf32> -> vector<32x256xf32>
    %c0_3 = arith.constant 0 : index
    %c0_4 = arith.constant 0 : index
    %3 = vector.load %arg5[%c0_3, %c0_4] : memref<32x16xbf16, #tpu.memory_space<vmem>>, vector<32x16xbf16>
    %c0_5 = arith.constant 0 : index
    %c0_6 = arith.constant 0 : index
    %4 = vector.load %arg2[%c0_5, %c0_6] : memref<16x256xbf16, #tpu.memory_space<vmem>>, vector<16x256xbf16>
    %cst_7 = arith.constant dense<0.000000e+00> : vector<32x256xf32>
    %5 = tpu.matmul %3, %4, %cst_7 {dimension_numbers = #tpu.dot_dimension_numbers<[1], [0], [0], [1], [0, 0, 1, 1], [], []>} : vector<32x16xbf16>, vector<16x256xbf16>, vector<32x256xf32> -> vector<32x256xf32>
    %6 = arith.addf %2, %5 : vector<32x256xf32>
    %c0_8 = arith.constant 0 : index
    %c0_9 = arith.constant 0 : index
    %7 = vector.load %arg6[%c0_8, %c0_9] : memref<32x1xf32, #tpu.memory_space<vmem>>, vector<32x1xf32>
    %8 = vector.broadcast %7 : vector<32x1xf32> to vector<32x256xf32>
    %9 = arith.addf %6, %8 : vector<32x256xf32>
    %10 = math.tanh %9 : vector<32x256xf32>
    %c0_10 = arith.constant 0 : index
    %c0_11 = arith.constant 0 : index
    %11 = vector.load %arg7[%c0_10, %c0_11] : memref<256x32xbf16, #tpu.memory_space<vmem>>, vector<256x32xbf16>
    %12 = arith.truncf %10 : vector<32x256xf32> to vector<32x256xbf16>
    %cst_12 = arith.constant dense<0.000000e+00> : vector<256x256xf32>
    %13 = tpu.matmul %11, %12, %cst_12 {dimension_numbers = #tpu.dot_dimension_numbers<[1], [0], [0], [1], [0, 0, 1, 1], [], []>} : vector<256x32xbf16>, vector<32x256xbf16>, vector<256x256xf32> -> vector<256x256xf32>
    %c0_13 = arith.constant 0 : index
    %c0_14 = arith.constant 0 : index
    %14 = vector.load %arg8[%c0_13, %c0_14] : memref<256x1xf32, #tpu.memory_space<vmem>>, vector<256x1xf32>
    %15 = vector.broadcast %14 : vector<256x1xf32> to vector<256x256xf32>
    %16 = arith.addf %13, %15 : vector<256x256xf32>
    %17 = math.tanh %16 : vector<256x256xf32>
    %c0_15 = arith.constant 0 : index
    %c0_16 = arith.constant 0 : index
    %18 = vector.load %arg9[%c0_15, %c0_16] : memref<256x16xbf16, #tpu.memory_space<vmem>>, vector<256x16xbf16>
    %c0_17 = arith.constant 0 : index
    %c0_18 = arith.constant 0 : index
    %19 = vector.load %arg3[%c0_17, %c0_18] : memref<16x256xbf16, #tpu.memory_space<vmem>>, vector<16x256xbf16>
    %cst_19 = arith.constant dense<0.000000e+00> : vector<256x256xf32>
    %20 = tpu.matmul %18, %19, %cst_19 {dimension_numbers = #tpu.dot_dimension_numbers<[1], [0], [0], [1], [0, 0, 1, 1], [], []>} : vector<256x16xbf16>, vector<16x256xbf16>, vector<256x256xf32> -> vector<256x256xf32>
    %21 = arith.mulf %17, %20 : vector<256x256xf32>
    %22 = arith.truncf %21 : vector<256x256xf32> to vector<256x256xbf16>
    %c0_20 = arith.constant 0 : index
    %c0_21 = arith.constant 0 : index
    %23 = vector.load %arg10[%c0_20, %c0_21] : memref<16x256xbf16, #tpu.memory_space<vmem>>, vector<16x256xbf16>
    %cst_22 = arith.constant dense<0.000000e+00> : vector<16x256xf32>
    %24 = tpu.matmul %23, %22, %cst_22 {dimension_numbers = #tpu.dot_dimension_numbers<[1], [0], [0], [1], [0, 0, 1, 1], [], []>} : vector<16x256xbf16>, vector<256x256xbf16>, vector<16x256xf32> -> vector<16x256xf32>
    %c0_23 = arith.constant 0 : index
    %c0_24 = arith.constant 0 : index
    %25 = vector.load %arg11[%c0_23, %c0_24] : memref<16x16xbf16, #tpu.memory_space<vmem>>, vector<16x16xbf16>
    %26 = arith.truncf %24 : vector<16x256xf32> to vector<16x256xbf16>
    %cst_25 = arith.constant dense<0.000000e+00> : vector<16x256xf32>
    %27 = tpu.matmul %25, %26, %cst_25 {dimension_numbers = #tpu.dot_dimension_numbers<[1], [0], [0], [1], [0, 0, 1, 1], [], []>} : vector<16x16xbf16>, vector<16x256xbf16>, vector<16x256xf32> -> vector<16x256xf32>
    %28 = math.tanh %27 : vector<16x256xf32>
    %c0_26 = arith.constant 0 : index
    %c0_27 = arith.constant 0 : index
    %29 = vector.load %arg12[%c0_26, %c0_27] : memref<16x256xf32, #tpu.memory_space<vmem>>, vector<16x256xf32>
    tpu.vector_store %arg12[%c0_26, %c0_27], %28 {strides = array<i32>} : memref<16x256xf32, #tpu.memory_space<vmem>>, vector<16x256xf32>,
    return
  }
  func.func @transform_0(%arg0: i32) -> (i32, i32) {
    %c0_i32 = arith.constant 0 : i32
    %c0_i32_0 = arith.constant 0 : i32
    return %c0_i32, %arg0 : i32, i32
  }
  func.func @transform_1(%arg0: i32) -> (i32, i32) {
    %c0_i32 = arith.constant 0 : i32
    %c0_i32_0 = arith.constant 0 : i32
    return %c0_i32, %arg0 : i32, i32
  }
  func.func @transform_2(%arg0: i32) -> (i32, i32) {
    %c0_i32 = arith.constant 0 : i32
    %c0_i32_0 = arith.constant 0 : i32
    return %c0_i32, %arg0 : i32, i32
  }
  func.func @transform_3(%arg0: i32) -> (i32, i32) {
    %c0_i32 = arith.constant 0 : i32
    %c0_i32_0 = arith.constant 0 : i32
    %c0_i32_1 = arith.constant 0 : i32
    return %c0_i32, %c0_i32_0 : i32, i32
  }
  func.func @transform_4(%arg0: i32) -> (i32, i32) {
    %c0_i32 = arith.constant 0 : i32
    %c0_i32_0 = arith.constant 0 : i32
    %c0_i32_1 = arith.constant 0 : i32
    return %c0_i32, %c0_i32_0 : i32, i32
  }
  func.func @transform_5(%arg0: i32) -> (i32, i32) {
    %c0_i32 = arith.constant 0 : i32
    %c0_i32_0 = arith.constant 0 : i32
    %c0_i32_1 = arith.constant 0 : i32
    return %c0_i32, %c0_i32_0 : i32, i32
  }
  func.func @transform_6(%arg0: i32) -> (i32, i32) {
    %c0_i32 = arith.constant 0 : i32
    %c0_i32_0 = arith.constant 0 : i32
    %c0_i32_1 = arith.constant 0 : i32
    return %c0_i32, %c0_i32_0 : i32, i32
  }
  func.func @transform_7(%arg0: i32) -> (i32, i32) {
    %c0_i32 = arith.constant 0 : i32
    %c0_i32_0 = arith.constant 0 : i32
    %c0_i32_1 = arith.constant 0 : i32
    return %c0_i32, %c0_i32_0 : i32, i32
  }
  func.func @transform_8(%arg0: i32) -> (i32, i32) {
    %c0_i32 = arith.constant 0 : i32
    %c0_i32_0 = arith.constant 0 : i32
    %c0_i32_1 = arith.constant 0 : i32
    return %c0_i32, %c0_i32_0 : i32, i32
  }
  func.func @transform_9(%arg0: i32) -> (i32, i32) {
    %c0_i32 = arith.constant 0 : i32
    %c0_i32_0 = arith.constant 0 : i32
    %c0_i32_1 = arith.constant 0 : i32
    return %c0_i32, %c0_i32_0 : i32, i32
  }
  func.func @transform_10(%arg0: i32) -> (i32, i32) {
    %c0_i32 = arith.constant 0 : i32
    %c0_i32_0 = arith.constant 0 : i32
    %c0_i32_1 = arith.constant 0 : i32
    return %c0_i32, %c0_i32_0 : i32, i32
  }
  func.func @transform_11(%arg0: i32) -> (i32, i32) {
    %c0_i32 = arith.constant 0 : i32
    %c0_i32_0 = arith.constant 0 : i32
    return %c0_i32, %arg0 : i32, i32
  }
}

</mosaic_0001>

<llo_original>
// kernel: tpu_custom_call.1
$region0: #{tpu_custom_call.1}
  #allocation0 [shape = 'u32[]', space=smem, size = 0x4, offset = 0x4, fixed_abs, tag = 'smem constant byte address 0x4 - core index']
  #allocation1 [shape = 'u32[144,128]{1,0:T(1,128)}', space=vmem, size = 0x12000, scoped, tag = 'internal scratch']
  %s0 = inlined_call_operand.vmem [shape: bf16[16,1024], index: 0, kind: input, shape index: {}]
  %s1 = inlined_call_operand.vmem [shape: bf16[16,1024], index: 1, kind: input, shape index: {}]
  %s2 = inlined_call_operand.vmem [shape: bf16[16,1024], index: 2, kind: input, shape index: {}]
  %s3 = inlined_call_operand.vmem [shape: bf16[32,16], index: 3, kind: input, shape index: {}]
  %s4 = inlined_call_operand.vmem [shape: bf16[32,16], index: 4, kind: input, shape index: {}]
  %s5 = inlined_call_operand.vmem [shape: f32[32,1], index: 5, kind: input, shape index: {}]
  %s6 = inlined_call_operand.vmem [shape: bf16[256,32], index: 6, kind: input, shape index: {}]
  %s7 = inlined_call_operand.vmem [shape: f32[256,1], index: 7, kind: input, shape index: {}]
  %s8 = inlined_call_operand.vmem [shape: bf16[256,16], index: 8, kind: input, shape index: {}]
  %s9 = inlined_call_operand.vmem [shape: bf16[16,256], index: 9, kind: input, shape index: {}]
  %s10 = inlined_call_operand.vmem [shape: bf16[16,16], index: 10, kind: input, shape index: {}]
  %s11 = inlined_call_operand.hbm [shape: f32[16,1024], index: 11, kind: output, shape index: {}]
  %s12 = sld [smem:[#allocation0]]
  $region191: #{tpu_custom_call.1} parent=0
    _
  %s14 = ssub.s32 1, %s12
  %s15 = scalar_select 0, %s14, %s12
  $region1: #{tpu_custom_call.1} parent=0
    #allocation2 [shape = 'u8[16384]{0}', space=vmem, size = 0x4000, scoped, tag = 'input window, operand 0']
    #allocation3 [shape = 'u8[16384]{0}', space=vmem, size = 0x4000, scoped, tag = 'input window, operand 1']
    #allocation4 [shape = 'u8[16384]{0}', space=vmem, size = 0x4000, scoped, tag = 'input window, operand 2']
    #allocation5 [shape = 'u8[32768]{0}', space=vmem, size = 0x8000, scoped, tag = 'output window, operand 0']
    #allocation6 [shape = 's32[2]{0}', space=sflag, size = 0x8, scoped, tag = 'scoped memory for tpu_custom_call.1']
    %16 = vsyncpa [#allocation6], 0
    %s17 = scalar_lea.sflag [#allocation6], 1
    %18 = vsyncpa %s17, 0
    loop: start=0, step=1, limit=6
    $region2: #{tpu_custom_call.1} parent=1 // loop_pre_header
      _
    $region3: #{tpu_custom_call.1} parent=1 // loop_header
      %s20 = sphi 0, %s24
      %p21 = scmp.ge.s32.totalorder %s20, 6
      %s30 = sphi 0, %s32
      %s33 = sphi 0, %s30
      %s34 = sphi 0, %s33
      %s50 = sphi 0, %s34
      %s56 = sphi 0, %s58
      %s59 = sphi 0, %s56
      %s60 = sphi 0, %s59
      %s76 = sphi 0, %s60
      %s82 = sphi 0, %s84
      %s85 = sphi 0, %s82
      %s86 = sphi 0, %s85
      %s102 = sphi 0, %s86
      %s106 = sphi 0, %s106
      %s108 = sphi 0, %s106
      %s109 = sphi 0, %s108
      %s123 = sphi 0, %s109
      %s127 = sphi 0, %s127
      %s129 = sphi 0, %s127
      %s130 = sphi 0, %s129
      %s144 = sphi 0, %s130
      %s148 = sphi 0, %s148
      %s150 = sphi 0, %s148
      %s151 = sphi 0, %s150
      %s165 = sphi 0, %s151
      %s169 = sphi 0, %s169
      %s171 = sphi 0, %s169
      %s172 = sphi 0, %s171
      %s186 = sphi 0, %s172
      %s190 = sphi 0, %s190
      %s192 = sphi 0, %s190
      %s193 = sphi 0, %s192
      %s207 = sphi 0, %s193
      %s211 = sphi 0, %s211
      %s213 = sphi 0, %s211
      %s214 = sphi 0, %s213
      %s228 = sphi 0, %s214
      %s232 = sphi 0, %s232
      %s234 = sphi 0, %s232
      %s235 = sphi 0, %s234
      %s249 = sphi 0, %s235
      %s253 = sphi 0, %s253
      %s255 = sphi 0, %s253
      %s256 = sphi 0, %s255
      %s270 = sphi 0, %s256
      %s276 = sphi 0, %s278
      %s279 = sphi 0, %s276
      %s280 = sphi 0, %s279
      %s296 = sphi 0, %s280
    $region4: #{tpu_custom_call.1} parent=1 // loop_header_branch
      %23 = sbr.rel (%p21) target = $region8
    $region5: #{tpu_custom_call.1} parent=1 // loop_body
      %s25 = ssub.s32 %s20, 1
      %s26 = ssub.s32 %s20, 2
      %s27 = sadd.s32 %s20, 1
      %s28 = ssub.s32 %s20, %s27
      %p29 = scmp.eq.s32.totalorder %s28, 0
      %s31 = sadd.s32 %s30, 1
      %s32 = scalar_select %p29, %s30, %s31
      %p35 = pneg %p29
      %p36 = scmp.eq.s32.totalorder %s20, 3
      %p37 = por %p35, %p36
      %p38 = scmp.ne.s32.totalorder %s30, %s33
      %p39 = scmp.eq.s32.totalorder %s20, 0
      %p40 = por %p38, %p39
      %p41 = scmp.ne.s32.totalorder %s30, %s33
      %p42 = scmp.eq.s32.totalorder %s25, 3
      %p43 = por %p41, %p42
      %p44 = scmp.ne.s32.totalorder %s33, %s34
      %p45 = scmp.eq.s32.totalorder %s25, 0
      %p46 = por %p44, %p45
      %p47 = scmp.ne.s32.totalorder %s33, %s34
      %p48 = scmp.eq.s32.totalorder %s26, 3
      %p49 = por %p47, %p48
      %p51 = scmp.ne.s32.totalorder %s34, %s50
      %p52 = scmp.eq.s32.totalorder %s26, 0
      %p53 = por %p51, %p52
      %s54 = ssub.s32 %s20, %s27
      %p55 = scmp.eq.s32.totalorder %s54, 0
      %s57 = sadd.s32 %s56, 1
      %s58 = scalar_select %p55, %s56, %s57
      %p61 = pneg %p55
      %p62 = scmp.eq.s32.totalorder %s20, 3
      %p63 = por %p61, %p62
      %p64 = scmp.ne.s32.totalorder %s56, %s59
      %p65 = scmp.eq.s32.totalorder %s20, 0
      %p66 = por %p64, %p65
      %p67 = scmp.ne.s32.totalorder %s56, %s59
      %p68 = scmp.eq.s32.totalorder %s25, 3
      %p69 = por %p67, %p68
      %p70 = scmp.ne.s32.totalorder %s59, %s60
      %p71 = scmp.eq.s32.totalorder %s25, 0
      %p72 = por %p70, %p71
      %p73 = scmp.ne.s32.totalorder %s59, %s60
      %p74 = scmp.eq.s32.totalorder %s26, 3
      %p75 = por %p73, %p74
      %p77 = scmp.ne.s32.totalorder %s60, %s76
      %p78 = scmp.eq.s32.totalorder %s26, 0
      %p79 = por %p77, %p78
      %s80 = ssub.s32 %s20, %s27
      %p81 = scmp.eq.s32.totalorder %s80, 0
      %s83 = sadd.s32 %s82, 1
      %s84 = scalar_select %p81, %s82, %s83
      %p87 = pneg %p81
      %p88 = scmp.eq.s32.totalorder %s20, 3
      %p89 = por %p87, %p88
      %p90 = scmp.ne.s32.totalorder %s82, %s85
      %p91 = scmp.eq.s32.totalorder %s20, 0
      %p92 = por %p90, %p91
      %p93 = scmp.ne.s32.totalorder %s82, %s85
      %p94 = scmp.eq.s32.totalorder %s25, 3
      %p95 = por %p93, %p94
      %p96 = scmp.ne.s32.totalorder %s85, %s86
      %p97 = scmp.eq.s32.totalorder %s25, 0
      %p98 = por %p96, %p97
      %p99 = scmp.ne.s32.totalorder %s85, %s86
      %p100 = scmp.eq.s32.totalorder %s26, 3
      %p101 = por %p99, %p100
      %p103 = scmp.ne.s32.totalorder %s86, %s102
      %p104 = scmp.eq.s32.totalorder %s26, 0
      %p105 = por %p103, %p104
      %s107 = sadd.s32 %s106, 1
      %p110 = scmp.eq.s32.totalorder %s20, 3
      %p111 = scmp.ne.s32.totalorder %s106, %s108
      %p112 = scmp.eq.s32.totalorder %s20, 0
      %p113 = por %p111, %p112
      %p114 = scmp.ne.s32.totalorder %s106, %s108
      %p115 = scmp.eq.s32.totalorder %s25, 3
      %p116 = por %p114, %p115
      %p117 = scmp.ne.s32.totalorder %s108, %s109
      %p118 = scmp.eq.s32.totalorder %s25, 0
      %p119 = por %p117, %p118
      %p120 = scmp.ne.s32.totalorder %s108, %s109
      %p121 = scmp.eq.s32.totalorder %s26, 3
      %p122 = por %p120, %p121
      %p124 = scmp.ne.s32.totalorder %s109, %s123
      %p125 = scmp.eq.s32.totalorder %s26, 0
      %p126 = por %p124, %p125
      %s128 = sadd.s32 %s127, 1
      %p131 = scmp.eq.s32.totalorder %s20, 3
      %p132 = scmp.ne.s32.totalorder %s127, %s129
      %p133 = scmp.eq.s32.totalorder %s20, 0
      %p134 = por %p132, %p133
      %p135 = scmp.ne.s32.totalorder %s127, %s129
      %p136 = scmp.eq.s32.totalorder %s25, 3
      %p137 = por %p135, %p136
      %p138 = scmp.ne.s32.totalorder %s129, %s130
      %p139 = scmp.eq.s32.totalorder %s25, 0
      %p140 = por %p138, %p139
      %p141 = scmp.ne.s32.totalorder %s129, %s130
      %p142 = scmp.eq.s32.totalorder %s26, 3
      %p143 = por %p141, %p142
      %p145 = scmp.ne.s32.totalorder %s130, %s144
      %p146 = scmp.eq.s32.totalorder %s26, 0
      %p147 = por %p145, %p146
      %s149 = sadd.s32 %s148, 1
      %p152 = scmp.eq.s32.totalorder %s20, 3
      %p153 = scmp.ne.s32.totalorder %s148, %s150
      %p154 = scmp.eq.s32.totalorder %s20, 0
      %p155 = por %p153, %p154
      %p156 = scmp.ne.s32.totalorder %s148, %s150
      %p157 = scmp.eq.s32.totalorder %s25, 3
      %p158 = por %p156, %p157
      %p159 = scmp.ne.s32.totalorder %s150, %s151
      %p160 = scmp.eq.s32.totalorder %s25, 0
      %p161 = por %p159, %p160
      %p162 = scmp.ne.s32.totalorder %s150, %s151
      %p163 = scmp.eq.s32.totalorder %s26, 3
      %p164 = por %p162, %p163
      %p166 = scmp.ne.s32.totalorder %s151, %s165
      %p167 = scmp.eq.s32.totalorder %s26, 0
      %p168 = por %p166, %p167
      %s170 = sadd.s32 %s169, 1
      %p173 = scmp.eq.s32.totalorder %s20, 3
      %p174 = scmp.ne.s32.totalorder %s169, %s171
      %p175 = scmp.eq.s32.totalorder %s20, 0
      %p176 = por %p174, %p175
      %p177 = scmp.ne.s32.totalorder %s169, %s171
      %p178 = scmp.eq.s32.totalorder %s25, 3
      %p179 = por %p177, %p178
      %p180 = scmp.ne.s32.totalorder %s171, %s172
      %p181 = scmp.eq.s32.totalorder %s25, 0
      %p182 = por %p180, %p181
      %p183 = scmp.ne.s32.totalorder %s171, %s172
      %p184 = scmp.eq.s32.totalorder %s26, 3
      %p185 = por %p183, %p184
      %p187 = scmp.ne.s32.totalorder %s172, %s186
      %p188 = scmp.eq.s32.totalorder %s26, 0
      %p189 = por %p187, %p188
      %s191 = sadd.s32 %s190, 1
      %p194 = scmp.eq.s32.totalorder %s20, 3
      %p195 = scmp.ne.s32.totalorder %s190, %s192
      %p196 = scmp.eq.s32.totalorder %s20, 0
      %p197 = por %p195, %p196
      %p198 = scmp.ne.s32.totalorder %s190, %s192
      %p199 = scmp.eq.s32.totalorder %s25, 3
      %p200 = por %p198, %p199
      %p201 = scmp.ne.s32.totalorder %s192, %s193
      %p202 = scmp.eq.s32.totalorder %s25, 0
      %p203 = por %p201, %p202
      %p204 = scmp.ne.s32.totalorder %s192, %s193
      %p205 = scmp.eq.s32.totalorder %s26, 3
      %p206 = por %p204, %p205
      %p208 = scmp.ne.s32.totalorder %s193, %s207
      %p209 = scmp.eq.s32.totalorder %s26, 0
      %p210 = por %p208, %p209
      %s212 = sadd.s32 %s211, 1
      %p215 = scmp.eq.s32.totalorder %s20, 3
      %p216 = scmp.ne.s32.totalorder %s211, %s213
      %p217 = scmp.eq.s32.totalorder %s20, 0
      %p218 = por %p216, %p217
      %p219 = scmp.ne.s32.totalorder %s211, %s213
      %p220 = scmp.eq.s32.totalorder %s25, 3
      %p221 = por %p219, %p220
      %p222 = scmp.ne.s32.totalorder %s213, %s214
      %p223 = scmp.eq.s32.totalorder %s25, 0
      %p224 = por %p222, %p223
      %p225 = scmp.ne.s32.totalorder %s213, %s214
      %p226 = scmp.eq.s32.totalorder %s26, 3
      %p227 = por %p225, %p226
      %p229 = scmp.ne.s32.totalorder %s214, %s228
      %p230 = scmp.eq.s32.totalorder %s26, 0
      %p231 = por %p229, %p230
      %s233 = sadd.s32 %s232, 1
      %p236 = scmp.eq.s32.totalorder %s20, 3
      %p237 = scmp.ne.s32.totalorder %s232, %s234
      %p238 = scmp.eq.s32.totalorder %s20, 0
      %p239 = por %p237, %p238
      %p240 = scmp.ne.s32.totalorder %s232, %s234
      %p241 = scmp.eq.s32.totalorder %s25, 3
      %p242 = por %p240, %p241
      %p243 = scmp.ne.s32.totalorder %s234, %s235
      %p244 = scmp.eq.s32.totalorder %s25, 0
      %p245 = por %p243, %p244
      %p246 = scmp.ne.s32.totalorder %s234, %s235
      %p247 = scmp.eq.s32.totalorder %s26, 3
      %p248 = por %p246, %p247
      %p250 = scmp.ne.s32.totalorder %s235, %s249
      %p251 = scmp.eq.s32.totalorder %s26, 0
      %p252 = por %p250, %p251
      %s254 = sadd.s32 %s253, 1
      %p257 = scmp.eq.s32.totalorder %s20, 3
      %p258 = scmp.ne.s32.totalorder %s253, %s255
      %p259 = scmp.eq.s32.totalorder %s20, 0
      %p260 = por %p258, %p259
      %p261 = scmp.ne.s32.totalorder %s253, %s255
      %p262 = scmp.eq.s32.totalorder %s25, 3
      %p263 = por %p261, %p262
      %p264 = scmp.ne.s32.totalorder %s255, %s256
      %p265 = scmp.eq.s32.totalorder %s25, 0
      %p266 = por %p264, %p265
      %p267 = scmp.ne.s32.totalorder %s255, %s256
      %p268 = scmp.eq.s32.totalorder %s26, 3
      %p269 = por %p267, %p268
      %p271 = scmp.ne.s32.totalorder %s256, %s270
      %p272 = scmp.eq.s32.totalorder %s26, 0
      %p273 = por %p271, %p272
      %s274 = ssub.s32 %s20, %s27
      %p275 = scmp.eq.s32.totalorder %s274, 0
      %s277 = sadd.s32 %s276, 1
      %s278 = scalar_select %p275, %s276, %s277
      %p281 = pneg %p275
      %p282 = scmp.eq.s32.totalorder %s20, 3
      %p283 = por %p281, %p282
      %p284 = scmp.ne.s32.totalorder %s276, %s279
      %p285 = scmp.eq.s32.totalorder %s20, 0
      %p286 = por %p284, %p285
      %p287 = scmp.ne.s32.totalorder %s276, %s279
      %p288 = scmp.eq.s32.totalorder %s25, 3
      %p289 = por %p287, %p288
      %p290 = scmp.ne.s32.totalorder %s279, %s280
      %p291 = scmp.eq.s32.totalorder %s25, 0
      %p292 = por %p290, %p291
      %p293 = scmp.ne.s32.totalorder %s279, %s280
      %p294 = scmp.eq.s32.totalorder %s26, 3
      %p295 = por %p293, %p294
      %p297 = scmp.ne.s32.totalorder %s280, %s296
      %p298 = scmp.eq.s32.totalorder %s26, 0
      %p299 = por %p297, %p298
      %p300 = scmp.le.s32.totalorder 1, %s20
      %p301 = scmp.lt.s32.totalorder %s20, 5
      %p302 = pnand %p300, %p301
      %p303 = pneg %p302
      // Predicated region
      $region9: #{tpu_custom_call.1} parent=5 // pred_check
        _
      $region10: #{tpu_custom_call.1} parent=5 // pred_check_branch
        %305 = sbr.rel (%p302) target = $region12
      $region11: #{tpu_custom_call.1} parent=5 // pred_region
        %s306 = ssub.s32 %s20, 1
        // Predicated region
        $region13: #{tpu_custom_call.1} parent=11 // pred_check
          %p307 = pneg %p119
        $region14: #{tpu_custom_call.1} parent=11 // pred_check_branch
          %309 = sbr.rel (%p307) target = $region16
        $region15: #{tpu_custom_call.1} parent=11 // pred_region
          _
        $region16: #{tpu_custom_call.1} parent=11 // pred_fallthru
          _
        // Predicated region
        $region17: #{tpu_custom_call.1} parent=11 // pred_check
          %p310 = pneg %p140
        $region18: #{tpu_custom_call.1} parent=11 // pred_check_branch
          %312 = sbr.rel (%p310) target = $region20
        $region19: #{tpu_custom_call.1} parent=11 // pred_region
          _
        $region20: #{tpu_custom_call.1} parent=11 // pred_fallthru
          _
        // Predicated region
        $region21: #{tpu_custom_call.1} parent=11 // pred_check
          %p313 = pneg %p161
        $region22: #{tpu_custom_call.1} parent=11 // pred_check_branch
          %315 = sbr.rel (%p313) target = $region24
        $region23: #{tpu_custom_call.1} parent=11 // pred_region
          _
        $region24: #{tpu_custom_call.1} parent=11 // pred_fallthru
          _
        // Predicated region
        $region25: #{tpu_custom_call.1} parent=11 // pred_check
          %p316 = pneg %p182
        $region26: #{tpu_custom_call.1} parent=11 // pred_check_branch
          %318 = sbr.rel (%p316) target = $region28
        $region27: #{tpu_custom_call.1} parent=11 // pred_region
          _
        $region28: #{tpu_custom_call.1} parent=11 // pred_fallthru
          _
        // Predicated region
        $region29: #{tpu_custom_call.1} parent=11 // pred_check
          %p319 = pneg %p203
        $region30: #{tpu_custom_call.1} parent=11 // pred_check_branch
          %321 = sbr.rel (%p319) target = $region32
        $region31: #{tpu_custom_call.1} parent=11 // pred_region
          _
        $region32: #{tpu_custom_call.1} parent=11 // pred_fallthru
          _
        // Predicated region
        $region33: #{tpu_custom_call.1} parent=11 // pred_check
          %p322 = pneg %p224
        $region34: #{tpu_custom_call.1} parent=11 // pred_check_branch
          %324 = sbr.rel (%p322) target = $region36
        $region35: #{tpu_custom_call.1} parent=11 // pred_region
          _
        $region36: #{tpu_custom_call.1} parent=11 // pred_fallthru
          _
        // Predicated region
        $region37: #{tpu_custom_call.1} parent=11 // pred_check
          %p325 = pneg %p245
        $region38: #{tpu_custom_call.1} parent=11 // pred_check_branch
          %327 = sbr.rel (%p325) target = $region40
        $region39: #{tpu_custom_call.1} parent=11 // pred_region
          _
        $region40: #{tpu_custom_call.1} parent=11 // pred_fallthru
          _
        // Predicated region
        $region41: #{tpu_custom_call.1} parent=11 // pred_check
          %p328 = pneg %p266
        $region42: #{tpu_custom_call.1} parent=11 // pred_check_branch
          %330 = sbr.rel (%p328) target = $region44
        $region43: #{tpu_custom_call.1} parent=11 // pred_region
          _
        $region44: #{tpu_custom_call.1} parent=11 // pred_fallthru
          _
      $region12: #{tpu_custom_call.1} parent=5 // pred_fallthru
        _
      %p331 = scmp.lt.s32.totalorder %s20, 4
      // Predicated region
      $region45: #{tpu_custom_call.1} parent=5 // pred_check
        %p332 = pneg %p331
      $region46: #{tpu_custom_call.1} parent=5 // pred_check_branch
        %334 = sbr.rel (%p332) target = $region48
      $region47: #{tpu_custom_call.1} parent=5 // pred_region
        // Predicated region
        $region49: #{tpu_custom_call.1} parent=47 // pred_check
          %p335 = pneg %p40
        $region50: #{tpu_custom_call.1} parent=47 // pred_check_branch
          %337 = sbr.rel (%p335) target = $region52
        $region51: #{tpu_custom_call.1} parent=47 // pred_region
          %s338 = sand.u32 %s30, 1
          %s339 = sand.u32 %s30, 1
          %s340 = smul.addr %s339, 16
          %s341 = scalar_lea.vmem [#allocation2], %s340
          %s342 = smul.u32 2, %s20
          %s343 = smul.addr %s342, 4
          %s344 = scalar_lea.vmem %s0, %s343
          // Predicated region
          $region53: #{tpu_custom_call.1} parent=51 // pred_check
            _
          $region54: #{tpu_custom_call.1} parent=51 // pred_check_branch
            %346 = sbr.rel (0) target = $region56
          $region55: #{tpu_custom_call.1} parent=51 // pred_region
            // Predicated region
            $region57: #{tpu_custom_call.1} parent=55 // pred_check
              _
            $region58: #{tpu_custom_call.1} parent=55 // pred_check_branch
              %348 = sbr.rel (0) target = $region60
            $region59: #{tpu_custom_call.1} parent=55 // pred_region
              // Predicated region
              $region72: #{tpu_custom_call.1} parent=59 // pred_check
                _
              $region73: #{tpu_custom_call.1} parent=59 // pred_check_branch
                %366 = sbr.rel (0) target = $region75
              $region74: #{tpu_custom_call.1} parent=59 // pred_region
                loop: start=0, step=1, limit=1
                $region76: #{tpu_custom_call.1} parent=74 // loop_pre_header
                  _
                $region77: #{tpu_custom_call.1} parent=74 // loop_header
                  %s368 = sphi 0, %s372
                  %p369 = scmp.ge.s32.totalorder %s368, 1
                  %s373 = sphi %s344, %s344
                  %s374 = sphi %s341, %s341
                $region78: #{tpu_custom_call.1} parent=74 // loop_header_branch
                  %371 = sbr.rel (%p369) target = $region82
                $region79: #{tpu_custom_call.1} parent=74 // loop_body
                  %v375 = vld [vmem:[%s373] sm:$0xff]
                  %376 = vst [vmem:[%s374] sm:$0xff] %v375
                  %v377 = vld [vmem:[%s373 + $0x20] sm:$0xff]
                  %378 = vst [vmem:[%s374 + $0x8] sm:$0xff] %v377
                $region80: #{tpu_custom_call.1} parent=74 // loop_footer
                  %s372 = sadd.s32 1, %s368
                $region81: #{tpu_custom_call.1} parent=74 // loop_footer_branch
                  %367 = sbr.rel target = $region77
                $region82: #{tpu_custom_call.1} parent=74 // loop_exit
                  _
              $region75: #{tpu_custom_call.1} parent=59 // pred_fallthru
                _
              // Predicated region
              $region83: #{tpu_custom_call.1} parent=59 // pred_check
                _
              $region84: #{tpu_custom_call.1} parent=59 // pred_check_branch
                %380 = sbr.rel target = $region86
              $region85: #{tpu_custom_call.1} parent=59 // pred_region
                _
              $region86: #{tpu_custom_call.1} parent=59 // pred_fallthru
                _
            $region60: #{tpu_custom_call.1} parent=55 // pred_fallthru
              _
            // Predicated region
            $region61: #{tpu_custom_call.1} parent=55 // pred_check
              _
            $region62: #{tpu_custom_call.1} parent=55 // pred_check_branch
              %350 = sbr.rel target = $region64
            $region63: #{tpu_custom_call.1} parent=55 // pred_region
              %s352 = ssub.s32 256, 1
              loop: start=0, step=1, limit=1
              $region65: #{tpu_custom_call.1} parent=63 // loop_pre_header
                _
              $region66: #{tpu_custom_call.1} parent=63 // loop_header
                %s354 = sphi 0, %s358
                %p355 = scmp.ge.s32.totalorder %s354, 1
                %s359 = sphi %s344, %s344
                %s360 = sphi %s341, %s341
              $region67: #{tpu_custom_call.1} parent=63 // loop_header_branch
                %357 = sbr.rel (%p355) target = $region71
              $region68: #{tpu_custom_call.1} parent=63 // loop_body
                %v361 = vld [vmem:[%s359] sm:%s352]
                %362 = vst [vmem:[%s360] sm:%s352] %v361
                %v363 = vld [vmem:[%s359 + $0x20] sm:%s352]
                %364 = vst [vmem:[%s360 + $0x8] sm:%s352] %v363
              $region69: #{tpu_custom_call.1} parent=63 // loop_footer
                %s358 = sadd.s32 1, %s354
              $region70: #{tpu_custom_call.1} parent=63 // loop_footer_branch
                %353 = sbr.rel target = $region66
              $region71: #{tpu_custom_call.1} parent=63 // loop_exit
                _
            $region64: #{tpu_custom_call.1} parent=55 // pred_fallthru
              _
          $region56: #{tpu_custom_call.1} parent=51 // pred_fallthru
            _
          %381 = vnop
        $region52: #{tpu_custom_call.1} parent=47 // pred_fallthru
          _
        // Predicated region
        $region87: #{tpu_custom_call.1} parent=47 // pred_check
          %p382 = pneg %p66
        $region88: #{tpu_custom_call.1} parent=47 // pred_check_branch
          %384 = sbr.rel (%p382) target = $region90
        $region89: #{tpu_custom_call.1} parent=47 // pred_region
          %s385 = sand.u32 %s56, 1
          %s386 = sand.u32 %s56, 1
          %s387 = smul.addr %s386, 16
          %s388 = scalar_lea.vmem [#allocation3], %s387
          %s389 = smul.u32 2, %s20
          %s390 = smul.addr %s389, 4
          %s391 = scalar_lea.vmem %s1, %s390
          // Predicated region
          $region91: #{tpu_custom_call.1} parent=89 // pred_check
            _
          $region92: #{tpu_custom_call.1} parent=89 // pred_check_branch
            %393 = sbr.rel (0) target = $region94
          $region93: #{tpu_custom_call.1} parent=89 // pred_region
            // Predicated region
            $region95: #{tpu_custom_call.1} parent=93 // pred_check
              _
            $region96: #{tpu_custom_call.1} parent=93 // pred_check_branch
              %395 = sbr.rel (0) target = $region98
            $region97: #{tpu_custom_call.1} parent=93 // pred_region
              // Predicated region
              $region110: #{tpu_custom_call.1} parent=97 // pred_check
                _
              $region111: #{tpu_custom_call.1} parent=97 // pred_check_branch
                %413 = sbr.rel (0) target = $region113
              $region112: #{tpu_custom_call.1} parent=97 // pred_region
                loop: start=0, step=1, limit=1
                $region114: #{tpu_custom_call.1} parent=112 // loop_pre_header
                  _
                $region115: #{tpu_custom_call.1} parent=112 // loop_header
                  %s415 = sphi 0, %s419
                  %p416 = scmp.ge.s32.totalorder %s415, 1
                  %s420 = sphi %s391, %s391
                  %s421 = sphi %s388, %s388
                $region116: #{tpu_custom_call.1} parent=112 // loop_header_branch
                  %418 = sbr.rel (%p416) target = $region120
                $region117: #{tpu_custom_call.1} parent=112 // loop_body
                  %v422 = vld [vmem:[%s420] sm:$0xff]
                  %423 = vst [vmem:[%s421] sm:$0xff] %v422
                  %v424 = vld [vmem:[%s420 + $0x20] sm:$0xff]
                  %425 = vst [vmem:[%s421 + $0x8] sm:$0xff] %v424
                $region118: #{tpu_custom_call.1} parent=112 // loop_footer
                  %s419 = sadd.s32 1, %s415
                $region119: #{tpu_custom_call.1} parent=112 // loop_footer_branch
                  %414 = sbr.rel target = $region115
                $region120: #{tpu_custom_call.1} parent=112 // loop_exit
                  _
              $region113: #{tpu_custom_call.1} parent=97 // pred_fallthru
                _
              // Predicated region
              $region121: #{tpu_custom_call.1} parent=97 // pred_check
                _
              $region122: #{tpu_custom_call.1} parent=97 // pred_check_branch
                %427 = sbr.rel target = $region124
              $region123: #{tpu_custom_call.1} parent=97 // pred_region
                _
              $region124: #{tpu_custom_call.1} parent=97 // pred_fallthru
                _
            $region98: #{tpu_custom_call.1} parent=93 // pred_fallthru
              _
            // Predicated region
            $region99: #{tpu_custom_call.1} parent=93 // pred_check
              _
            $region100: #{tpu_custom_call.1} parent=93 // pred_check_branch
              %397 = sbr.rel target = $region102
            $region101: #{tpu_custom_call.1} parent=93 // pred_region
              %s399 = ssub.s32 256, 1
              loop: start=0, step=1, limit=1
              $region103: #{tpu_custom_call.1} parent=101 // loop_pre_header
                _
              $region104: #{tpu_custom_call.1} parent=101 // loop_header
                %s401 = sphi 0, %s405
                %p402 = scmp.ge.s32.totalorder %s401, 1
                %s406 = sphi %s391, %s391
                %s407 = sphi %s388, %s388
              $region105: #{tpu_custom_call.1} parent=101 // loop_header_branch
                %404 = sbr.rel (%p402) target = $region109
              $region106: #{tpu_custom_call.1} parent=101 // loop_body
                %v408 = vld [vmem:[%s406] sm:%s399]
                %409 = vst [vmem:[%s407] sm:%s399] %v408
                %v410 = vld [vmem:[%s406 + $0x20] sm:%s399]
                %411 = vst [vmem:[%s407 + $0x8] sm:%s399] %v410
              $region107: #{tpu_custom_call.1} parent=101 // loop_footer
                %s405 = sadd.s32 1, %s401
              $region108: #{tpu_custom_call.1} parent=101 // loop_footer_branch
                %400 = sbr.rel target = $region104
              $region109: #{tpu_custom_call.1} parent=101 // loop_exit
                _
            $region102: #{tpu_custom_call.1} parent=93 // pred_fallthru
              _
          $region94: #{tpu_custom_call.1} parent=89 // pred_fallthru
            _
          %428 = vnop
        $region90: #{tpu_custom_call.1} parent=47 // pred_fallthru
          _
        // Predicated region
        $region125: #{tpu_custom_call.1} parent=47 // pred_check
          %p429 = pneg %p92
        $region126: #{tpu_custom_call.1} parent=47 // pred_check_branch
          %431 = sbr.rel (%p429) target = $region128
        $region127: #{tpu_custom_call.1} parent=47 // pred_region
          %s432 = sand.u32 %s82, 1
          %s433 = sand.u32 %s82, 1
          %s434 = smul.addr %s433, 16
          %s435 = scalar_lea.vmem [#allocation4], %s434
          %s436 = smul.u32 2, %s20
          %s437 = smul.addr %s436, 4
          %s438 = scalar_lea.vmem %s2, %s437
          // Predicated region
          $region129: #{tpu_custom_call.1} parent=127 // pred_check
            _
          $region130: #{tpu_custom_call.1} parent=127 // pred_check_branch
            %440 = sbr.rel (0) target = $region132
          $region131: #{tpu_custom_call.1} parent=127 // pred_region
            // Predicated region
            $region133: #{tpu_custom_call.1} parent=131 // pred_check
              _
            $region134: #{tpu_custom_call.1} parent=131 // pred_check_branch
              %442 = sbr.rel (0) target = $region136
            $region135: #{tpu_custom_call.1} parent=131 // pred_region
              // Predicated region
              $region148: #{tpu_custom_call.1} parent=135 // pred_check
                _
              $region149: #{tpu_custom_call.1} parent=135 // pred_check_branch
                %460 = sbr.rel (0) target = $region151
              $region150: #{tpu_custom_call.1} parent=135 // pred_region
                loop: start=0, step=1, limit=1
                $region152: #{tpu_custom_call.1} parent=150 // loop_pre_header
                  _
                $region153: #{tpu_custom_call.1} parent=150 // loop_header
                  %s462 = sphi 0, %s466
                  %p463 = scmp.ge.s32.totalorder %s462, 1
                  %s467 = sphi %s438, %s438
                  %s468 = sphi %s435, %s435
                $region154: #{tpu_custom_call.1} parent=150 // loop_header_branch
                  %465 = sbr.rel (%p463) target = $region158
                $region155: #{tpu_custom_call.1} parent=150 // loop_body
                  %v469 = vld [vmem:[%s467] sm:$0xff]
                  %470 = vst [vmem:[%s468] sm:$0xff] %v469
                  %v471 = vld [vmem:[%s467 + $0x20] sm:$0xff]
                  %472 = vst [vmem:[%s468 + $0x8] sm:$0xff] %v471
                $region156: #{tpu_custom_call.1} parent=150 // loop_footer
                  %s466 = sadd.s32 1, %s462
                $region157: #{tpu_custom_call.1} parent=150 // loop_footer_branch
                  %461 = sbr.rel target = $region153
                $region158: #{tpu_custom_call.1} parent=150 // loop_exit
                  _
              $region151: #{tpu_custom_call.1} parent=135 // pred_fallthru
                _
              // Predicated region
              $region159: #{tpu_custom_call.1} parent=135 // pred_check
                _
              $region160: #{tpu_custom_call.1} parent=135 // pred_check_branch
                %474 = sbr.rel target = $region162
              $region161: #{tpu_custom_call.1} parent=135 // pred_region
                _
              $region162: #{tpu_custom_call.1} parent=135 // pred_fallthru
                _
            $region136: #{tpu_custom_call.1} parent=131 // pred_fallthru
              _
            // Predicated region
            $region137: #{tpu_custom_call.1} parent=131 // pred_check
              _
            $region138: #{tpu_custom_call.1} parent=131 // pred_check_branch
              %444 = sbr.rel target = $region140
            $region139: #{tpu_custom_call.1} parent=131 // pred_region
              %s446 = ssub.s32 256, 1
              loop: start=0, step=1, limit=1
              $region141: #{tpu_custom_call.1} parent=139 // loop_pre_header
                _
              $region142: #{tpu_custom_call.1} parent=139 // loop_header
                %s448 = sphi 0, %s452
                %p449 = scmp.ge.s32.totalorder %s448, 1
                %s453 = sphi %s438, %s438
                %s454 = sphi %s435, %s435
              $region143: #{tpu_custom_call.1} parent=139 // loop_header_branch
                %451 = sbr.rel (%p449) target = $region147
              $region144: #{tpu_custom_call.1} parent=139 // loop_body
                %v455 = vld [vmem:[%s453] sm:%s446]
                %456 = vst [vmem:[%s454] sm:%s446] %v455
                %v457 = vld [vmem:[%s453 + $0x20] sm:%s446]
                %458 = vst [vmem:[%s454 + $0x8] sm:%s446] %v457
              $region145: #{tpu_custom_call.1} parent=139 // loop_footer
                %s452 = sadd.s32 1, %s448
              $region146: #{tpu_custom_call.1} parent=139 // loop_footer_branch
                %447 = sbr.rel target = $region142
              $region147: #{tpu_custom_call.1} parent=139 // loop_exit
                _
            $region140: #{tpu_custom_call.1} parent=131 // pred_fallthru
              _
          $region132: #{tpu_custom_call.1} parent=127 // pred_fallthru
            _
          %475 = vnop
        $region128: #{tpu_custom_call.1} parent=47 // pred_fallthru
          _
      $region48: #{tpu_custom_call.1} parent=5 // pred_fallthru
        _
      %p476 = scmp.le.s32.totalorder 1, %s20
      %p477 = scmp.lt.s32.totalorder %s20, 5
      %p478 = pnand %p476, %p477
      %p479 = pneg %p478
      // Predicated region
      $region163: #{tpu_custom_call.1} parent=5 // pred_check
        _
      $region164: #{tpu_custom_call.1} parent=5 // pred_check_branch
        %481 = sbr.rel (%p478) target = $region166
      $region165: #{tpu_custom_call.1} parent=5 // pred_region
        %s482 = ssub.s32 %s20, 1
        %s483 = sand.u32 %s33, 1
        %s484 = sand.u32 %s33, 1
        %s485 = smul.addr %s484, 16
        %s486 = scalar_lea.vmem [#allocation2], %s485
        // Predicated region
        $region167: #{tpu_custom_call.1} parent=165 // pred_check
          %p487 = pneg %p46
        $region168: #{tpu_custom_call.1} parent=165 // pred_check_branch
          %489 = sbr.rel (%p487) target = $region170
        $region169: #{tpu_custom_call.1} parent=165 // pred_region
          _
        $region170: #{tpu_custom_call.1} parent=165 // pred_fallthru
          _
        %s490 = sand.u32 %s59, 1
        %s491 = sand.u32 %s59, 1
        %s492 = smul.addr %s491, 16
        %s493 = scalar_lea.vmem [#allocation3], %s492
        // Predicated region
        $region171: #{tpu_custom_call.1} parent=165 // pred_check
          %p494 = pneg %p72
        $region172: #{tpu_custom_call.1} parent=165 // pred_check_branch
          %496 = sbr.rel (%p494) target = $region174
        $region173: #{tpu_custom_call.1} parent=165 // pred_region
          _
        $region174: #{tpu_custom_call.1} parent=165 // pred_fallthru
          _
        %s497 = sand.u32 %s85, 1
        %s498 = sand.u32 %s85, 1
        %s499 = smul.addr %s498, 16
        %s500 = scalar_lea.vmem [#allocation4], %s499
        // Predicated region
        $region175: #{tpu_custom_call.1} parent=165 // pred_check
          %p501 = pneg %p98
        $region176: #{tpu_custom_call.1} parent=165 // pred_check_branch
          %503 = sbr.rel (%p501) target = $region178
        $region177: #{tpu_custom_call.1} parent=165 // pred_region
          _
        $region178: #{tpu_custom_call.1} parent=165 // pred_fallthru
          _
        %s504 = sand.u32 %s33, 1
        %s505 = sand.u32 %s33, 1
        %s506 = smul.addr %s505, 16
        %s507 = scalar_lea.vmem [#allocation2], %s506
        %p508 = pneg %p46
        %p509 = pneg %p43
        %s510 = sand.u32 %s59, 1
        %s511 = sand.u32 %s59, 1
        %s512 = smul.addr %s511, 16
        %s513 = scalar_lea.vmem [#allocation3], %s512
        %p514 = pneg %p72
        %p515 = pneg %p69
        %s516 = sand.u32 %s85, 1
        %s517 = sand.u32 %s85, 1
        %s518 = smul.addr %s517, 16
        %s519 = scalar_lea.vmem [#allocation4], %s518
        %p520 = pneg %p98
        %p521 = pneg %p95
        %p522 = pneg %p119
        %p523 = pneg %p116
        %p524 = pneg %p140
        %p525 = pneg %p137
        %p526 = pneg %p161
        %p527 = pneg %p158
        %p528 = pneg %p182
        %p529 = pneg %p179
        %p530 = pneg %p203
        %p531 = pneg %p200
        %p532 = pneg %p224
        %p533 = pneg %p221
        %p534 = pneg %p245
        %p535 = pneg %p242
        %p536 = pneg %p266
        %p537 = pneg %p263
        %p538 = pneg %p292
        %p539 = pneg %p289
        %s540 = sand.u32 %s279, 1
        %s541 = scalar_lea.sflag [#allocation6], %s540
        %s542 = sand.u32 %s279, 1
        %s543 = smul.addr %s542, 32
        %s544 = scalar_lea.vmem [#allocation5], %s543
        %s545 = smul.u32 2, %s25
        %s546 = smul.u32 2, %s25
        %s547 = smul.u32 2, %s25
        %s548 = smul.u32 2, %s25
        %v550 = vld [vmem:[%s3] sm:$0xf]
        %v551 = vld [vmem:[%s3 + $0x4] sm:$0xf]
        %v552 = vld [vmem:[%s3 + $0x8] sm:$0xf]
        %v553 = vld [vmem:[%s3 + $0xc] sm:$0xf]
        %v554 = vld [vmem:[%s486] sm:$0xff]
        %v555 = vld [vmem:[%s486 + $0x8] sm:$0xff]
        %v556 = vld [vmem:[%s4] sm:$0xf]
        %v557 = vld [vmem:[%s4 + $0x4] sm:$0xf]
        %v558 = vld [vmem:[%s4 + $0x8] sm:$0xf]
        %v559 = vld [vmem:[%s4 + $0xc] sm:$0xf]
        %v560 = vld [vmem:[%s493] sm:$0xff]
        %v561 = vld [vmem:[%s493 + $0x8] sm:$0xff]
        %v566 = vunpack.c.l.b16 %v556
        %v567 = vunpack.c.l.b16 %v557
        %v568 = vunpack.c.l.b16 %v558
        %v569 = vunpack.c.l.b16 %v559
        %v570 = vpack.c.b16 %v567, %v566
        %v571 = vpack.c.b16 %v569, %v568
        %v574 = vunpack.c.l.b16 %v560
        %v575 = vunpack.c.h.b16 %v560
        %v576 = vunpack.c.l.b16 %v561
        %v577 = vunpack.c.h.b16 %v561
        %v578 = vpack.c.b16 %v576, %v574
        %v579 = vpack.c.b16 %v577, %v575
        %vm582 = vcmask 130048
        %v584 = vsel %vm582, %v570, 0
        %v587 = vsel %vm582, %v571, 0
        %589 = vmatprep.subr.bf16.mxu0 0
        %590 = vmatpush1.bf16.msra.mxu0 0
        %591 = vmatprep.subr.bf16.mxu0 0
        %592 = vmatpush1.bf16.msra.mxu0 0
        %593 = vmatprep.subr.bf16.mxu0 0
        %594 = vmatpush1.bf16.msra.mxu0 0
        %595 = vmatprep.subr.bf16.mxu0 0
        %596 = vmatpush1.bf16.msra.mxu0 0
        %597 = vmatprep.subr.bf16.mxu0 0
        %598 = vmatpush1.bf16.msra.mxu0 0
        %599 = vmatprep.subr.bf16.mxu0 0
        %600 = vmatpush1.bf16.msra.mxu0 0
        %601 = vmatprep.subr.bf16.mxu0 0
        %602 = vmatpush1.bf16.msra.mxu0 0
        %603 = vmatprep.subr.bf16.mxu0 %v579
        %604 = vmatpush1.bf16.msra.mxu0 %v578
        %605 = vmatprep.subr.bf16.mxu0 0
        %606 = vmatpush2.bf16.msra.mxu0 0
        %607 = vmatprep.subr.bf16.mxu0 0
        %608 = vmatpush2.bf16.msra.mxu0 0
        %609 = vmatprep.subr.bf16.mxu0 0
        %610 = vmatpush2.bf16.msra.mxu0 0
        %611 = vmatprep.subr.bf16.mxu0 0
        %612 = vmatpush2.bf16.msra.mxu0 0
        %613 = vmatprep.subr.bf16.mxu0 0
        %614 = vmatpush2.bf16.msra.mxu0 0
        %615 = vmatprep.subr.bf16.mxu0 0
        %616 = vmatpush2.bf16.msra.mxu0 0
        %617 = vmatprep.subr.bf16.mxu0 0
        %618 = vmatpush2.bf16.msra.mxu0 0
        %619 = vmatprep.subr.bf16.mxu0 0
        %620 = vmatpush2.bf16.msra.mxu0 0
        %621 = vmatprep.mubr.bf16.mxu0 0
        %622 = vmatmul.mubr.bf16.gmra.mxu0 %v584
        %v623 = vpop.f32.mrf.mxu0
        %v624 = vadd.f32 0.0, %v623
        %v625 = vpop.f32.mrf.mxu0
        %v626 = vadd.f32 0.0, %v625
        %v627 = vpop.f32.mrf.mxu0
        %v628 = vadd.f32 0.0, %v627
        %v629 = vpop.f32.mrf.mxu0
        %v630 = vadd.f32 0.0, %v629
        %631 = vmatprep.mubr.bf16.mxu0 0
        %632 = vmatmul.mubr.bf16.gmra.mxu0 %v587
        %v633 = vpop.f32.mrf.mxu0
        %v634 = vadd.f32 0.0, %v633
        %v635 = vpop.f32.mrf.mxu0
        %v636 = vadd.f32 0.0, %v635
        %v637 = vpop.f32.mrf.mxu0
        %v638 = vadd.f32 0.0, %v637
        %v639 = vpop.f32.mrf.mxu0
        %v640 = vadd.f32 0.0, %v639
        %641 = vdwg.mxu0
        %v646 = vunpack.c.l.b16 %v550
        %v647 = vunpack.c.l.b16 %v551
        %v648 = vunpack.c.l.b16 %v552
        %v649 = vunpack.c.l.b16 %v553
        %v650 = vpack.c.b16 %v647, %v646
        %v651 = vpack.c.b16 %v649, %v648
        %v654 = vunpack.c.l.b16 %v554
        %v655 = vunpack.c.h.b16 %v554
        %v656 = vunpack.c.l.b16 %v555
        %v657 = vunpack.c.h.b16 %v555
        %v658 = vpack.c.b16 %v656, %v654
        %v659 = vpack.c.b16 %v657, %v655
        %v663 = vsel %vm582, %v650, 0
        %v666 = vsel %vm582, %v651, 0
        %668 = vmatprep.subr.bf16.mxu0 0
        %669 = vmatpush1.bf16.msra.mxu0 0
        %670 = vmatprep.subr.bf16.mxu0 0
        %671 = vmatpush1.bf16.msra.mxu0 0
        %672 = vmatprep.subr.bf16.mxu0 0
        %673 = vmatpush1.bf16.msra.mxu0 0
        %674 = vmatprep.subr.bf16.mxu0 0
        %675 = vmatpush1.bf16.msra.mxu0 0
        %676 = vmatprep.subr.bf16.mxu0 0
        %677 = vmatpush1.bf16.msra.mxu0 0
        %678 = vmatprep.subr.bf16.mxu0 0
        %679 = vmatpush1.bf16.msra.mxu0 0
        %680 = vmatprep.subr.bf16.mxu0 0
        %681 = vmatpush1.bf16.msra.mxu0 0
        %682 = vmatprep.subr.bf16.mxu0 %v659
        %683 = vmatpush1.bf16.msra.mxu0 %v658
        %684 = vmatprep.subr.bf16.mxu0 0
        %685 = vmatpush2.bf16.msra.mxu0 0
        %686 = vmatprep.subr.bf16.mxu0 0
        %687 = vmatpush2.bf16.msra.mxu0 0
        %688 = vmatprep.subr.bf16.mxu0 0
        %689 = vmatpush2.bf16.msra.mxu0 0
        %690 = vmatprep.subr.bf16.mxu0 0
        %691 = vmatpush2.bf16.msra.mxu0 0
        %692 = vmatprep.subr.bf16.mxu0 0
        %693 = vmatpush2.bf16.msra.mxu0 0
        %694 = vmatprep.subr.bf16.mxu0 0
        %695 = vmatpush2.bf16.msra.mxu0 0
        %696 = vmatprep.subr.bf16.mxu0 0
        %697 = vmatpush2.bf16.msra.mxu0 0
        %698 = vmatprep.subr.bf16.mxu0 0
        %699 = vmatpush2.bf16.msra.mxu0 0
        %700 = vmatprep.mubr.bf16.mxu0 0
        %701 = vmatmul.mubr.bf16.gmra.mxu0 %v663
        %v702 = vpop.f32.mrf.mxu0
        %v703 = vadd.f32 %v624, %v702
        %v704 = vpop.f32.mrf.mxu0
        %v705 = vadd.f32 %v626, %v704
        %v706 = vpop.f32.mrf.mxu0
        %v707 = vadd.f32 %v628, %v706
        %v708 = vpop.f32.mrf.mxu0
        %v709 = vadd.f32 %v630, %v708
        %710 = vmatprep.mubr.bf16.mxu0 0
        %711 = vmatmul.mubr.bf16.gmra.mxu0 %v666
        %v712 = vpop.f32.mrf.mxu0
        %v713 = vadd.f32 %v634, %v712
        %v714 = vpop.f32.mrf.mxu0
        %v715 = vadd.f32 %v636, %v714
        %v716 = vpop.f32.mrf.mxu0
        %v717 = vadd.f32 %v638, %v716
        %v718 = vpop.f32.mrf.mxu0
        %v719 = vadd.f32 %v640, %v718
        %720 = vdwg.mxu0
        %v721 = vld [vmem:[%s5] sm:$0xff]
        %v722 = vld [vmem:[%s5 + $0x8] sm:$0xff]
        %v723 = vld [vmem:[%s5 + $0x10] sm:$0xff]
        %v724 = vld [vmem:[%s5 + $0x18] sm:$0xff]
        %726 = vset.pattern.permute.xlu0 0
        %727 = vperm.xlu0 %726, %v721
        %v728 = vpop.permute.xlu0 %727
        %731 = vset.pattern.permute.xlu0 0
        %732 = vperm.xlu0 %731, %v722
        %v733 = vpop.permute.xlu0 %732
        %736 = vset.pattern.permute.xlu0 0
        %737 = vperm.xlu0 %736, %v723
        %v738 = vpop.permute.xlu0 %737
        %741 = vset.pattern.permute.xlu0 0
        %742 = vperm.xlu0 %741, %v724
        %v743 = vpop.permute.xlu0 %742
        %v745 = vadd.f32 %v703, %v728
        %v746 = vadd.f32 %v705, %v728
        %v747 = vadd.f32 %v707, %v733
        %v748 = vadd.f32 %v709, %v733
        %v749 = vadd.f32 %v713, %v738
        %v750 = vadd.f32 %v715, %v738
        %v751 = vadd.f32 %v717, %v743
        %v752 = vadd.f32 %v719, %v743
        %v753 = vtanh.pop %v745
        %v754 = vtanh.pop %v746
        %v755 = vtanh.pop %v747
        %v756 = vtanh.pop %v748
        %v757 = vtanh.pop %v749
        %v758 = vtanh.pop %v750
        %v759 = vtanh.pop %v751
        %v760 = vtanh.pop %v752
        %v761 = vld [vmem:[%s6] sm:$0xf]
        %v762 = vld [vmem:[%s6 + $0x4] sm:$0xf]
        %v763 = vld [vmem:[%s6 + $0x8] sm:$0xf]
        %v764 = vld [vmem:[%s6 + $0xc] sm:$0xf]
        %v765 = vld [vmem:[%s6 + $0x10] sm:$0xf]
        %v766 = vld [vmem:[%s6 + $0x14] sm:$0xf]
        %v767 = vld [vmem:[%s6 + $0x18] sm:$0xf]
        %v768 = vld [vmem:[%s6 + $0x1c] sm:$0xf]
        %v769 = vld [vmem:[%s6 + $0x20] sm:$0xf]
        %v770 = vld [vmem:[%s6 + $0x24] sm:$0xf]
        %v771 = vld [vmem:[%s6 + $0x28] sm:$0xf]
        %v772 = vld [vmem:[%s6 + $0x2c] sm:$0xf]
        %v773 = vld [vmem:[%s6 + $0x30] sm:$0xf]
        %v774 = vld [vmem:[%s6 + $0x34] sm:$0xf]
        %v775 = vld [vmem:[%s6 + $0x38] sm:$0xf]
        %v776 = vld [vmem:[%s6 + $0x3c] sm:$0xf]
        %v777 = vld [vmem:[%s6 + $0x40] sm:$0xf]
        %v778 = vld [vmem:[%s6 + $0x44] sm:$0xf]
        %v779 = vld [vmem:[%s6 + $0x48] sm:$0xf]
        %v780 = vld [vmem:[%s6 + $0x4c] sm:$0xf]
        %v781 = vld [vmem:[%s6 + $0x50] sm:$0xf]
        %v782 = vld [vmem:[%s6 + $0x54] sm:$0xf]
        %v783 = vld [vmem:[%s6 + $0x58] sm:$0xf]
        %v784 = vld [vmem:[%s6 + $0x5c] sm:$0xf]
        %v785 = vld [vmem:[%s6 + $0x60] sm:$0xf]
        %v786 = vld [vmem:[%s6 + $0x64] sm:$0xf]
        %v787 = vld [vmem:[%s6 + $0x68] sm:$0xf]
        %v788 = vld [vmem:[%s6 + $0x6c] sm:$0xf]
        %v789 = vld [vmem:[%s6 + $0x70] sm:$0xf]
        %v790 = vld [vmem:[%s6 + $0x74] sm:$0xf]
        %v791 = vld [vmem:[%s6 + $0x78] sm:$0xf]
        %v792 = vld [vmem:[%s6 + $0x7c] sm:$0xf]
        %v793 = vpack.c.bf16 %v755, %v753
        %v794 = vpack.c.bf16 %v756, %v754
        %v795 = vpack.c.bf16 %v759, %v757
        %v796 = vpack.c.bf16 %v760, %v758
        %v797 = vld [vmem:[%s7] sm:$0xff]
        %v798 = vld [vmem:[%s7 + $0x8] sm:$0xff]
        %v799 = vld [vmem:[%s7 + $0x10] sm:$0xff]
        %v800 = vld [vmem:[%s7 + $0x18] sm:$0xff]
        %v801 = vld [vmem:[%s7 + $0x20] sm:$0xff]
        %v802 = vld [vmem:[%s7 + $0x28] sm:$0xff]
        %v803 = vld [vmem:[%s7 + $0x30] sm:$0xff]
        %v804 = vld [vmem:[%s7 + $0x38] sm:$0xff]
        %v805 = vld [vmem:[%s7 + $0x40] sm:$0xff]
        %v806 = vld [vmem:[%s7 + $0x48] sm:$0xff]
        %v807 = vld [vmem:[%s7 + $0x50] sm:$0xff]
        %v808 = vld [vmem:[%s7 + $0x58] sm:$0xff]
        %v809 = vld [vmem:[%s7 + $0x60] sm:$0xff]
        %v810 = vld [vmem:[%s7 + $0x68] sm:$0xff]
        %v811 = vld [vmem:[%s7 + $0x70] sm:$0xff]
        %v812 = vld [vmem:[%s7 + $0x78] sm:$0xff]
        %v813 = vld [vmem:[%s7 + $0x80] sm:$0xff]
        %v814 = vld [vmem:[%s7 + $0x88] sm:$0xff]
        %v815 = vld [vmem:[%s7 + $0x90] sm:$0xff]
        %v816 = vld [vmem:[%s7 + $0x98] sm:$0xff]
        %v817 = vld [vmem:[%s7 + $0xa0] sm:$0xff]
        %v818 = vld [vmem:[%s7 + $0xa8] sm:$0xff]
        %v819 = vld [vmem:[%s7 + $0xb0] sm:$0xff]
        %v820 = vld [vmem:[%s7 + $0xb8] sm:$0xff]
        %v821 = vld [vmem:[%s7 + $0xc0] sm:$0xff]
        %v822 = vld [vmem:[%s7 + $0xc8] sm:$0xff]
        %v823 = vld [vmem:[%s7 + $0xd0] sm:$0xff]
        %v824 = vld [vmem:[%s7 + $0xd8] sm:$0xff]
        %v825 = vld [vmem:[%s7 + $0xe0] sm:$0xff]
        %v826 = vld [vmem:[%s7 + $0xe8] sm:$0xff]
        %v827 = vld [vmem:[%s7 + $0xf0] sm:$0xff]
        %v828 = vld [vmem:[%s7 + $0xf8] sm:$0xff]
        %830 = vset.pattern.permute.xlu0 0
        %831 = vperm.xlu0 %830, %v797
        %v832 = vpop.permute.xlu0 %831
        %835 = vset.pattern.permute.xlu0 0
        %836 = vperm.xlu0 %835, %v798
        %v837 = vpop.permute.xlu0 %836
        %840 = vset.pattern.permute.xlu0 0
        %841 = vperm.xlu0 %840, %v799
        %v842 = vpop.permute.xlu0 %841
        %845 = vset.pattern.permute.xlu0 0
        %846 = vperm.xlu0 %845, %v800
        %v847 = vpop.permute.xlu0 %846
        %850 = vset.pattern.permute.xlu0 0
        %851 = vperm.xlu0 %850, %v801
        %v852 = vpop.permute.xlu0 %851
        %855 = vset.pattern.permute.xlu0 0
        %856 = vperm.xlu0 %855, %v802
        %v857 = vpop.permute.xlu0 %856
        %860 = vset.pattern.permute.xlu0 0
        %861 = vperm.xlu0 %860, %v803
        %v862 = vpop.permute.xlu0 %861
        %865 = vset.pattern.permute.xlu0 0
        %866 = vperm.xlu0 %865, %v804
        %v867 = vpop.permute.xlu0 %866
        %870 = vset.pattern.permute.xlu0 0
        %871 = vperm.xlu0 %870, %v805
        %v872 = vpop.permute.xlu0 %871
        %875 = vset.pattern.permute.xlu0 0
        %876 = vperm.xlu0 %875, %v806
        %v877 = vpop.permute.xlu0 %876
        %880 = vset.pattern.permute.xlu0 0
        %881 = vperm.xlu0 %880, %v807
        %v882 = vpop.permute.xlu0 %881
        %885 = vset.pattern.permute.xlu0 0
        %886 = vperm.xlu0 %885, %v808
        %v887 = vpop.permute.xlu0 %886
        %890 = vset.pattern.permute.xlu0 0
        %891 = vperm.xlu0 %890, %v809
        %v892 = vpop.permute.xlu0 %891
        %895 = vset.pattern.permute.xlu0 0
        %896 = vperm.xlu0 %895, %v810
        %v897 = vpop.permute.xlu0 %896
        %900 = vset.pattern.permute.xlu0 0
        %901 = vperm.xlu0 %900, %v811
        %v902 = vpop.permute.xlu0 %901
        %905 = vset.pattern.permute.xlu0 0
        %906 = vperm.xlu0 %905, %v812
        %v907 = vpop.permute.xlu0 %906
        %910 = vset.pattern.permute.xlu0 0
        %911 = vperm.xlu0 %910, %v813
        %v912 = vpop.permute.xlu0 %911
        %915 = vset.pattern.permute.xlu0 0
        %916 = vperm.xlu0 %915, %v814
        %v917 = vpop.permute.xlu0 %916
        %920 = vset.pattern.permute.xlu0 0
        %921 = vperm.xlu0 %920, %v815
        %v922 = vpop.permute.xlu0 %921
        %925 = vset.pattern.permute.xlu0 0
        %926 = vperm.xlu0 %925, %v816
        %v927 = vpop.permute.xlu0 %926
        %930 = vset.pattern.permute.xlu0 0
        %931 = vperm.xlu0 %930, %v817
        %v932 = vpop.permute.xlu0 %931
        %935 = vset.pattern.permute.xlu0 0
        %936 = vperm.xlu0 %935, %v818
        %v937 = vpop.permute.xlu0 %936
        %940 = vset.pattern.permute.xlu0 0
        %941 = vperm.xlu0 %940, %v819
        %v942 = vpop.permute.xlu0 %941
        %945 = vset.pattern.permute.xlu0 0
        %946 = vperm.xlu0 %945, %v820
        %v947 = vpop.permute.xlu0 %946
        %950 = vset.pattern.permute.xlu0 0
        %951 = vperm.xlu0 %950, %v821
        %v952 = vpop.permute.xlu0 %951
        %955 = vset.pattern.permute.xlu0 0
        %956 = vperm.xlu0 %955, %v822
        %v957 = vpop.permute.xlu0 %956
        %960 = vset.pattern.permute.xlu0 0
        %961 = vperm.xlu0 %960, %v823
        %v962 = vpop.permute.xlu0 %961
        %965 = vset.pattern.permute.xlu0 0
        %966 = vperm.xlu0 %965, %v824
        %v967 = vpop.permute.xlu0 %966
        %970 = vset.pattern.permute.xlu0 0
        %971 = vperm.xlu0 %970, %v825
        %v972 = vpop.permute.xlu0 %971
        %975 = vset.pattern.permute.xlu0 0
        %976 = vperm.xlu0 %975, %v826
        %v977 = vpop.permute.xlu0 %976
        %980 = vset.pattern.permute.xlu0 0
        %981 = vperm.xlu0 %980, %v827
        %v982 = vpop.permute.xlu0 %981
        %985 = vset.pattern.permute.xlu0 0
        %986 = vperm.xlu0 %985, %v828
        %v987 = vpop.permute.xlu0 %986
        %v1021 = vunpack.c.l.b16 %v761
        %v1022 = vunpack.c.l.b16 %v762
        %v1023 = vunpack.c.l.b16 %v763
        %v1024 = vunpack.c.l.b16 %v764
        %v1025 = vunpack.c.l.b16 %v765
        %v1026 = vunpack.c.l.b16 %v766
        %v1027 = vunpack.c.l.b16 %v767
        %v1028 = vunpack.c.l.b16 %v768
        %v1029 = vunpack.c.l.b16 %v769
        %v1030 = vunpack.c.l.b16 %v770
        %v1031 = vunpack.c.l.b16 %v771
        %v1032 = vunpack.c.l.b16 %v772
        %v1033 = vunpack.c.l.b16 %v773
        %v1034 = vunpack.c.l.b16 %v774
        %v1035 = vunpack.c.l.b16 %v775
        %v1036 = vunpack.c.l.b16 %v776
        %v1037 = vunpack.c.l.b16 %v777
        %v1038 = vunpack.c.l.b16 %v778
        %v1039 = vunpack.c.l.b16 %v779
        %v1040 = vunpack.c.l.b16 %v780
        %v1041 = vunpack.c.l.b16 %v781
        %v1042 = vunpack.c.l.b16 %v782
        %v1043 = vunpack.c.l.b16 %v783
        %v1044 = vunpack.c.l.b16 %v784
        %v1045 = vunpack.c.l.b16 %v785
        %v1046 = vunpack.c.l.b16 %v786
        %v1047 = vunpack.c.l.b16 %v787
        %v1048 = vunpack.c.l.b16 %v788
        %v1049 = vunpack.c.l.b16 %v789
        %v1050 = vunpack.c.l.b16 %v790
        %v1051 = vunpack.c.l.b16 %v791
        %v1052 = vunpack.c.l.b16 %v792
        %v1053 = vpack.c.b16 %v1022, %v1021
        %v1054 = vpack.c.b16 %v1024, %v1023
        %v1055 = vpack.c.b16 %v1026, %v1025
        %v1056 = vpack.c.b16 %v1028, %v1027
        %v1057 = vpack.c.b16 %v1030, %v1029
        %v1058 = vpack.c.b16 %v1032, %v1031
        %v1059 = vpack.c.b16 %v1034, %v1033
        %v1060 = vpack.c.b16 %v1036, %v1035
        %v1061 = vpack.c.b16 %v1038, %v1037
        %v1062 = vpack.c.b16 %v1040, %v1039
        %v1063 = vpack.c.b16 %v1042, %v1041
        %v1064 = vpack.c.b16 %v1044, %v1043
        %v1065 = vpack.c.b16 %v1046, %v1045
        %v1066 = vpack.c.b16 %v1048, %v1047
        %v1067 = vpack.c.b16 %v1050, %v1049
        %v1068 = vpack.c.b16 %v1052, %v1051
        %vm1069 = vcmask 261120
        %v1071 = vsel %vm1069, %v1053, 0
        %v1074 = vsel %vm1069, %v1054, 0
        %v1077 = vsel %vm1069, %v1055, 0
        %v1080 = vsel %vm1069, %v1056, 0
        %v1083 = vsel %vm1069, %v1057, 0
        %v1086 = vsel %vm1069, %v1058, 0
        %v1089 = vsel %vm1069, %v1059, 0
        %v1092 = vsel %vm1069, %v1060, 0
        %v1095 = vsel %vm1069, %v1061, 0
        %v1098 = vsel %vm1069, %v1062, 0
        %v1101 = vsel %vm1069, %v1063, 0
        %v1104 = vsel %vm1069, %v1064, 0
        %v1107 = vsel %vm1069, %v1065, 0
        %v1110 = vsel %vm1069, %v1066, 0
        %v1113 = vsel %vm1069, %v1067, 0
        %v1116 = vsel %vm1069, %v1068, 0
        %1118 = vmatprep.subr.bf16.mxu0 0
        %1119 = vmatpush1.bf16.msra.mxu0 0
        %1120 = vmatprep.subr.bf16.mxu0 0
        %1121 = vmatpush1.bf16.msra.mxu0 0
        %1122 = vmatprep.subr.bf16.mxu0 0
        %1123 = vmatpush1.bf16.msra.mxu0 0
        %1124 = vmatprep.subr.bf16.mxu0 0
        %1125 = vmatpush1.bf16.msra.mxu0 0
        %1126 = vmatprep.subr.bf16.mxu0 0
        %1127 = vmatpush1.bf16.msra.mxu0 0
        %1128 = vmatprep.subr.bf16.mxu0 0
        %1129 = vmatpush1.bf16.msra.mxu0 0
        %1130 = vmatprep.subr.bf16.mxu0 %v796
        %1131 = vmatpush1.bf16.msra.mxu0 %v795
        %1132 = vmatprep.subr.bf16.mxu0 %v794
        %1133 = vmatpush1.bf16.msra.mxu0 %v793
        %1134 = vmatprep.subr.bf16.mxu0 0
        %1135 = vmatpush2.bf16.msra.mxu0 0
        %1136 = vmatprep.subr.bf16.mxu0 0
        %1137 = vmatpush2.bf16.msra.mxu0 0
        %1138 = vmatprep.subr.bf16.mxu0 0
        %1139 = vmatpush2.bf16.msra.mxu0 0
        %1140 = vmatprep.subr.bf16.mxu0 0
        %1141 = vmatpush2.bf16.msra.mxu0 0
        %1142 = vmatprep.subr.bf16.mxu0 0
        %1143 = vmatpush2.bf16.msra.mxu0 0
        %1144 = vmatprep.subr.bf16.mxu0 0
        %1145 = vmatpush2.bf16.msra.mxu0 0
        %1146 = vmatprep.subr.bf16.mxu0 0
        %1147 = vmatpush2.bf16.msra.mxu0 0
        %1148 = vmatprep.subr.bf16.mxu0 0
        %1149 = vmatpush2.bf16.msra.mxu0 0
        %1150 = vmatprep.mubr.bf16.mxu0 0
        %1151 = vmatmul.mubr.bf16.gmra.mxu0 %v1071
        %v1152 = vpop.f32.mrf.mxu0
        %v1153 = vadd.f32 %v832, %v1152
        %v1154 = vpop.f32.mrf.mxu0
        %v1155 = vadd.f32 %v832, %v1154
        %v1156 = vpop.f32.mrf.mxu0
        %v1157 = vadd.f32 %v837, %v1156
        %v1158 = vpop.f32.mrf.mxu0
        %v1159 = vadd.f32 %v837, %v1158
        %1160 = vmatprep.mubr.bf16.mxu0 0
        %1161 = vmatmul.mubr.bf16.gmra.mxu0 %v1074
        %v1162 = vpop.f32.mrf.mxu0
        %v1163 = vadd.f32 %v842, %v1162
        %v1164 = vpop.f32.mrf.mxu0
        %v1165 = vadd.f32 %v842, %v1164
        %v1166 = vpop.f32.mrf.mxu0
        %v1167 = vadd.f32 %v847, %v1166
        %v1168 = vpop.f32.mrf.mxu0
        %v1169 = vadd.f32 %v847, %v1168
        %1170 = vmatprep.mubr.bf16.mxu0 0
        %1171 = vmatmul.mubr.bf16.gmra.mxu0 %v1077
        %v1172 = vpop.f32.mrf.mxu0
        %v1173 = vadd.f32 %v852, %v1172
        %v1174 = vpop.f32.mrf.mxu0
        %v1175 = vadd.f32 %v852, %v1174
        %v1176 = vpop.f32.mrf.mxu0
        %v1177 = vadd.f32 %v857, %v1176
        %v1178 = vpop.f32.mrf.mxu0
        %v1179 = vadd.f32 %v857, %v1178
        %1180 = vmatprep.mubr.bf16.mxu0 0
        %1181 = vmatmul.mubr.bf16.gmra.mxu0 %v1080
        %v1182 = vpop.f32.mrf.mxu0
        %v1183 = vadd.f32 %v862, %v1182
        %v1184 = vpop.f32.mrf.mxu0
        %v1185 = vadd.f32 %v862, %v1184
        %v1186 = vpop.f32.mrf.mxu0
        %v1187 = vadd.f32 %v867, %v1186
        %v1188 = vpop.f32.mrf.mxu0
        %v1189 = vadd.f32 %v867, %v1188
        %1190 = vmatprep.mubr.bf16.mxu0 0
        %1191 = vmatmul.mubr.bf16.gmra.mxu0 %v1083
        %v1192 = vpop.f32.mrf.mxu0
        %v1193 = vadd.f32 %v872, %v1192
        %v1194 = vpop.f32.mrf.mxu0
        %v1195 = vadd.f32 %v872, %v1194
        %v1196 = vpop.f32.mrf.mxu0
        %v1197 = vadd.f32 %v877, %v1196
        %v1198 = vpop.f32.mrf.mxu0
        %v1199 = vadd.f32 %v877, %v1198
        %1200 = vmatprep.mubr.bf16.mxu0 0
        %1201 = vmatmul.mubr.bf16.gmra.mxu0 %v1086
        %v1202 = vpop.f32.mrf.mxu0
        %v1203 = vadd.f32 %v882, %v1202
        %v1204 = vpop.f32.mrf.mxu0
        %v1205 = vadd.f32 %v882, %v1204
        %v1206 = vpop.f32.mrf.mxu0
        %v1207 = vadd.f32 %v887, %v1206
        %v1208 = vpop.f32.mrf.mxu0
        %v1209 = vadd.f32 %v887, %v1208
        %1210 = vmatprep.mubr.bf16.mxu0 0
        %1211 = vmatmul.mubr.bf16.gmra.mxu0 %v1089
        %v1212 = vpop.f32.mrf.mxu0
        %v1213 = vadd.f32 %v892, %v1212
        %v1214 = vpop.f32.mrf.mxu0
        %v1215 = vadd.f32 %v892, %v1214
        %v1216 = vpop.f32.mrf.mxu0
        %v1217 = vadd.f32 %v897, %v1216
        %v1218 = vpop.f32.mrf.mxu0
        %v1219 = vadd.f32 %v897, %v1218
        %1220 = vmatprep.mubr.bf16.mxu0 0
        %1221 = vmatmul.mubr.bf16.gmra.mxu0 %v1092
        %v1222 = vpop.f32.mrf.mxu0
        %v1223 = vadd.f32 %v902, %v1222
        %v1224 = vpop.f32.mrf.mxu0
        %v1225 = vadd.f32 %v902, %v1224
        %v1226 = vpop.f32.mrf.mxu0
        %v1227 = vadd.f32 %v907, %v1226
        %v1228 = vpop.f32.mrf.mxu0
        %v1229 = vadd.f32 %v907, %v1228
        %1230 = vmatprep.mubr.bf16.mxu0 0
        %1231 = vmatmul.mubr.bf16.gmra.mxu0 %v1095
        %v1232 = vpop.f32.mrf.mxu0
        %v1233 = vadd.f32 %v912, %v1232
        %v1234 = vpop.f32.mrf.mxu0
        %v1235 = vadd.f32 %v912, %v1234
        %v1236 = vpop.f32.mrf.mxu0
        %v1237 = vadd.f32 %v917, %v1236
        %v1238 = vpop.f32.mrf.mxu0
        %v1239 = vadd.f32 %v917, %v1238
        %1240 = vmatprep.mubr.bf16.mxu0 0
        %1241 = vmatmul.mubr.bf16.gmra.mxu0 %v1098
        %v1242 = vpop.f32.mrf.mxu0
        %v1243 = vadd.f32 %v922, %v1242
        %v1244 = vpop.f32.mrf.mxu0
        %v1245 = vadd.f32 %v922, %v1244
        %v1246 = vpop.f32.mrf.mxu0
        %v1247 = vadd.f32 %v927, %v1246
        %v1248 = vpop.f32.mrf.mxu0
        %v1249 = vadd.f32 %v927, %v1248
        %1250 = vmatprep.mubr.bf16.mxu0 0
        %1251 = vmatmul.mubr.bf16.gmra.mxu0 %v1101
        %v1252 = vpop.f32.mrf.mxu0
        %v1253 = vadd.f32 %v932, %v1252
        %v1254 = vpop.f32.mrf.mxu0
        %v1255 = vadd.f32 %v932, %v1254
        %v1256 = vpop.f32.mrf.mxu0
        %v1257 = vadd.f32 %v937, %v1256
        %v1258 = vpop.f32.mrf.mxu0
        %v1259 = vadd.f32 %v937, %v1258
        %1260 = vmatprep.mubr.bf16.mxu0 0
        %1261 = vmatmul.mubr.bf16.gmra.mxu0 %v1104
        %v1262 = vpop.f32.mrf.mxu0
        %v1263 = vadd.f32 %v942, %v1262
        %v1264 = vpop.f32.mrf.mxu0
        %v1265 = vadd.f32 %v942, %v1264
        %v1266 = vpop.f32.mrf.mxu0
        %v1267 = vadd.f32 %v947, %v1266
        %v1268 = vpop.f32.mrf.mxu0
        %v1269 = vadd.f32 %v947, %v1268
        %1270 = vmatprep.mubr.bf16.mxu0 0
        %1271 = vmatmul.mubr.bf16.gmra.mxu0 %v1107
        %v1272 = vpop.f32.mrf.mxu0
        %v1273 = vadd.f32 %v952, %v1272
        %v1274 = vpop.f32.mrf.mxu0
        %v1275 = vadd.f32 %v952, %v1274
        %v1276 = vpop.f32.mrf.mxu0
        %v1277 = vadd.f32 %v957, %v1276
        %v1278 = vpop.f32.mrf.mxu0
        %v1279 = vadd.f32 %v957, %v1278
        %1280 = vmatprep.mubr.bf16.mxu0 0
        %1281 = vmatmul.mubr.bf16.gmra.mxu0 %v1110
        %v1282 = vpop.f32.mrf.mxu0
        %v1283 = vadd.f32 %v962, %v1282
        %v1284 = vpop.f32.mrf.mxu0
        %v1285 = vadd.f32 %v962, %v1284
        %v1286 = vpop.f32.mrf.mxu0
        %v1287 = vadd.f32 %v967, %v1286
        %v1288 = vpop.f32.mrf.mxu0
        %v1289 = vadd.f32 %v967, %v1288
        %1290 = vmatprep.mubr.bf16.mxu0 0
        %1291 = vmatmul.mubr.bf16.gmra.mxu0 %v1113
        %v1292 = vpop.f32.mrf.mxu0
        %v1293 = vadd.f32 %v972, %v1292
        %v1294 = vpop.f32.mrf.mxu0
        %v1295 = vadd.f32 %v972, %v1294
        %v1296 = vpop.f32.mrf.mxu0
        %v1297 = vadd.f32 %v977, %v1296
        %v1298 = vpop.f32.mrf.mxu0
        %v1299 = vadd.f32 %v977, %v1298
        %1300 = vmatprep.mubr.bf16.mxu0 0
        %1301 = vmatmul.mubr.bf16.gmra.mxu0 %v1116
        %v1302 = vpop.f32.mrf.mxu0
        %v1303 = vadd.f32 %v982, %v1302
        %v1304 = vpop.f32.mrf.mxu0
        %v1305 = vadd.f32 %v982, %v1304
        %v1306 = vpop.f32.mrf.mxu0
        %v1307 = vadd.f32 %v987, %v1306
        %v1308 = vpop.f32.mrf.mxu0
        %v1309 = vadd.f32 %v987, %v1308
        %1310 = vdwg.mxu0
        %v1311 = vtanh.pop %v1153
        %v1312 = vtanh.pop %v1155
        %v1313 = vtanh.pop %v1157
        %v1314 = vtanh.pop %v1159
        %v1315 = vtanh.pop %v1163
        %v1316 = vtanh.pop %v1165
        %v1317 = vtanh.pop %v1167
        %v1318 = vtanh.pop %v1169
        %v1319 = vtanh.pop %v1173
        %v1320 = vtanh.pop %v1175
        %v1321 = vtanh.pop %v1177
        %v1322 = vtanh.pop %v1179
        %v1323 = vtanh.pop %v1183
        %v1324 = vtanh.pop %v1185
        %v1325 = vtanh.pop %v1187
        %v1326 = vtanh.pop %v1189
        %v1327 = vtanh.pop %v1193
        %v1328 = vtanh.pop %v1195
        %v1329 = vtanh.pop %v1197
        %v1330 = vtanh.pop %v1199
        %v1331 = vtanh.pop %v1203
        %v1332 = vtanh.pop %v1205
        %v1333 = vtanh.pop %v1207
        %v1334 = vtanh.pop %v1209
        %v1335 = vtanh.pop %v1213
        %v1336 = vtanh.pop %v1215
        %v1337 = vtanh.pop %v1217
        %v1338 = vtanh.pop %v1219
        %v1339 = vtanh.pop %v1223
        %v1340 = vtanh.pop %v1225
        %v1341 = vtanh.pop %v1227
        %v1342 = vtanh.pop %v1229
        %v1343 = vtanh.pop %v1233
        %v1344 = vtanh.pop %v1235
        %v1345 = vtanh.pop %v1237
        %v1346 = vtanh.pop %v1239
        %v1347 = vtanh.pop %v1243
        %v1348 = vtanh.pop %v1245
        %v1349 = vtanh.pop %v1247
        %v1350 = vtanh.pop %v1249
        %v1351 = vtanh.pop %v1253
        %v1352 = vtanh.pop %v1255
        %v1353 = vtanh.pop %v1257
        %v1354 = vtanh.pop %v1259
        %v1355 = vtanh.pop %v1263
        %v1356 = vtanh.pop %v1265
        %v1357 = vtanh.pop %v1267
        %v1358 = vtanh.pop %v1269
        %v1359 = vtanh.pop %v1273
        %v1360 = vtanh.pop %v1275
        %v1361 = vtanh.pop %v1277
        %v1362 = vtanh.pop %v1279
        %v1363 = vtanh.pop %v1283
        %v1364 = vtanh.pop %v1285
        %v1365 = vtanh.pop %v1287
        %v1366 = vtanh.pop %v1289
        %v1367 = vtanh.pop %v1293
        %v1368 = vtanh.pop %v1295
        %v1369 = vtanh.pop %v1297
        %v1370 = vtanh.pop %v1299
        %v1371 = vtanh.pop %v1303
        %v1372 = vtanh.pop %v1305
        %v1373 = vtanh.pop %v1307
        %v1374 = vtanh.pop %v1309
        %v1375 = vld [vmem:[%s8] sm:$0xf]
        %v1376 = vld [vmem:[%s8 + $0x4] sm:$0xf]
        %v1377 = vld [vmem:[%s8 + $0x8] sm:$0xf]
        %v1378 = vld [vmem:[%s8 + $0xc] sm:$0xf]
        %v1379 = vld [vmem:[%s8 + $0x10] sm:$0xf]
        %v1380 = vld [vmem:[%s8 + $0x14] sm:$0xf]
        %v1381 = vld [vmem:[%s8 + $0x18] sm:$0xf]
        %v1382 = vld [vmem:[%s8 + $0x1c] sm:$0xf]
        %v1383 = vld [vmem:[%s8 + $0x20] sm:$0xf]
        %v1384 = vld [vmem:[%s8 + $0x24] sm:$0xf]
        %v1385 = vld [vmem:[%s8 + $0x28] sm:$0xf]
        %v1386 = vld [vmem:[%s8 + $0x2c] sm:$0xf]
        %v1387 = vld [vmem:[%s8 + $0x30] sm:$0xf]
        %v1388 = vld [vmem:[%s8 + $0x34] sm:$0xf]
        %v1389 = vld [vmem:[%s8 + $0x38] sm:$0xf]
        %v1390 = vld [vmem:[%s8 + $0x3c] sm:$0xf]
        %v1391 = vld [vmem:[%s8 + $0x40] sm:$0xf]
        %v1392 = vld [vmem:[%s8 + $0x44] sm:$0xf]
        %v1393 = vld [vmem:[%s8 + $0x48] sm:$0xf]
        %v1394 = vld [vmem:[%s8 + $0x4c] sm:$0xf]
        %v1395 = vld [vmem:[%s8 + $0x50] sm:$0xf]
        %v1396 = vld [vmem:[%s8 + $0x54] sm:$0xf]
        %v1397 = vld [vmem:[%s8 + $0x58] sm:$0xf]
        %v1398 = vld [vmem:[%s8 + $0x5c] sm:$0xf]
        %v1399 = vld [vmem:[%s8 + $0x60] sm:$0xf]
        %v1400 = vld [vmem:[%s8 + $0x64] sm:$0xf]
        %v1401 = vld [vmem:[%s8 + $0x68] sm:$0xf]
        %v1402 = vld [vmem:[%s8 + $0x6c] sm:$0xf]
        %v1403 = vld [vmem:[%s8 + $0x70] sm:$0xf]
        %v1404 = vld [vmem:[%s8 + $0x74] sm:$0xf]
        %v1405 = vld [vmem:[%s8 + $0x78] sm:$0xf]
        %v1406 = vld [vmem:[%s8 + $0x7c] sm:$0xf]
        %v1407 = vld [vmem:[%s500] sm:$0xff]
        %v1408 = vld [vmem:[%s500 + $0x8] sm:$0xff]
        %v1441 = vunpack.c.l.b16 %v1375
        %v1442 = vunpack.c.l.b16 %v1376
        %v1443 = vunpack.c.l.b16 %v1377
        %v1444 = vunpack.c.l.b16 %v1378
        %v1445 = vunpack.c.l.b16 %v1379
        %v1446 = vunpack.c.l.b16 %v1380
        %v1447 = vunpack.c.l.b16 %v1381
        %v1448 = vunpack.c.l.b16 %v1382
        %v1449 = vunpack.c.l.b16 %v1383
        %v1450 = vunpack.c.l.b16 %v1384
        %v1451 = vunpack.c.l.b16 %v1385
        %v1452 = vunpack.c.l.b16 %v1386
        %v1453 = vunpack.c.l.b16 %v1387
        %v1454 = vunpack.c.l.b16 %v1388
        %v1455 = vunpack.c.l.b16 %v1389
        %v1456 = vunpack.c.l.b16 %v1390
        %v1457 = vunpack.c.l.b16 %v1391
        %v1458 = vunpack.c.l.b16 %v1392
        %v1459 = vunpack.c.l.b16 %v1393
        %v1460 = vunpack.c.l.b16 %v1394
        %v1461 = vunpack.c.l.b16 %v1395
        %v1462 = vunpack.c.l.b16 %v1396
        %v1463 = vunpack.c.l.b16 %v1397
        %v1464 = vunpack.c.l.b16 %v1398
        %v1465 = vunpack.c.l.b16 %v1399
        %v1466 = vunpack.c.l.b16 %v1400
        %v1467 = vunpack.c.l.b16 %v1401
        %v1468 = vunpack.c.l.b16 %v1402
        %v1469 = vunpack.c.l.b16 %v1403
        %v1470 = vunpack.c.l.b16 %v1404
        %v1471 = vunpack.c.l.b16 %v1405
        %v1472 = vunpack.c.l.b16 %v1406
        %v1473 = vpack.c.b16 %v1442, %v1441
        %v1474 = vpack.c.b16 %v1444, %v1443
        %v1475 = vpack.c.b16 %v1446, %v1445
        %v1476 = vpack.c.b16 %v1448, %v1447
        %v1477 = vpack.c.b16 %v1450, %v1449
        %v1478 = vpack.c.b16 %v1452, %v1451
        %v1479 = vpack.c.b16 %v1454, %v1453
        %v1480 = vpack.c.b16 %v1456, %v1455
        %v1481 = vpack.c.b16 %v1458, %v1457
        %v1482 = vpack.c.b16 %v1460, %v1459
        %v1483 = vpack.c.b16 %v1462, %v1461
        %v1484 = vpack.c.b16 %v1464, %v1463
        %v1485 = vpack.c.b16 %v1466, %v1465
        %v1486 = vpack.c.b16 %v1468, %v1467
        %v1487 = vpack.c.b16 %v1470, %v1469
        %v1488 = vpack.c.b16 %v1472, %v1471
        %v1491 = vunpack.c.l.b16 %v1407
        %v1492 = vunpack.c.h.b16 %v1407
        %v1493 = vunpack.c.l.b16 %v1408
        %v1494 = vunpack.c.h.b16 %v1408
        %v1495 = vpack.c.b16 %v1493, %v1491
        %v1496 = vpack.c.b16 %v1494, %v1492
        %v1500 = vsel %vm582, %v1473, 0
        %v1503 = vsel %vm582, %v1474, 0
        %v1506 = vsel %vm582, %v1475, 0
        %v1509 = vsel %vm582, %v1476, 0
        %v1512 = vsel %vm582, %v1477, 0
        %v1515 = vsel %vm582, %v1478, 0
        %v1518 = vsel %vm582, %v1479, 0
        %v1521 = vsel %vm582, %v1480, 0
        %v1524 = vsel %vm582, %v1481, 0
        %v1527 = vsel %vm582, %v1482, 0
        %v1530 = vsel %vm582, %v1483, 0
        %v1533 = vsel %vm582, %v1484, 0
        %v1536 = vsel %vm582, %v1485, 0
        %v1539 = vsel %vm582, %v1486, 0
        %v1542 = vsel %vm582, %v1487, 0
        %v1545 = vsel %vm582, %v1488, 0
        %1547 = vmatprep.subr.bf16.mxu0 0
        %1548 = vmatpush1.bf16.msra.mxu0 0
        %1549 = vmatprep.subr.bf16.mxu0 0
        %1550 = vmatpush1.bf16.msra.mxu0 0
        %1551 = vmatprep.subr.bf16.mxu0 0
        %1552 = vmatpush1.bf16.msra.mxu0 0
        %1553 = vmatprep.subr.bf16.mxu0 0
        %1554 = vmatpush1.bf16.msra.mxu0 0
        %1555 = vmatprep.subr.bf16.mxu0 0
        %1556 = vmatpush1.bf16.msra.mxu0 0
        %1557 = vmatprep.subr.bf16.mxu0 0
        %1558 = vmatpush1.bf16.msra.mxu0 0
        %1559 = vmatprep.subr.bf16.mxu0 0
        %1560 = vmatpush1.bf16.msra.mxu0 0
        %1561 = vmatprep.subr.bf16.mxu0 %v1496
        %1562 = vmatpush1.bf16.msra.mxu0 %v1495
        %1563 = vmatprep.subr.bf16.mxu0 0
        %1564 = vmatpush2.bf16.msra.mxu0 0
        %1565 = vmatprep.subr.bf16.mxu0 0
        %1566 = vmatpush2.bf16.msra.mxu0 0
        %1567 = vmatprep.subr.bf16.mxu0 0
        %1568 = vmatpush2.bf16.msra.mxu0 0
        %1569 = vmatprep.subr.bf16.mxu0 0
        %1570 = vmatpush2.bf16.msra.mxu0 0
        %1571 = vmatprep.subr.bf16.mxu0 0
        %1572 = vmatpush2.bf16.msra.mxu0 0
        %1573 = vmatprep.subr.bf16.mxu0 0
        %1574 = vmatpush2.bf16.msra.mxu0 0
        %1575 = vmatprep.subr.bf16.mxu0 0
        %1576 = vmatpush2.bf16.msra.mxu0 0
        %1577 = vmatprep.subr.bf16.mxu0 0
        %1578 = vmatpush2.bf16.msra.mxu0 0
        %1579 = vmatprep.mubr.bf16.mxu0 0
        %1580 = vmatmul.mubr.bf16.gmra.mxu0 %v1500
        %v1581 = vpop.f32.mrf.mxu0
        %v1582 = vadd.f32 0.0, %v1581
        %v1583 = vpop.f32.mrf.mxu0
        %v1584 = vadd.f32 0.0, %v1583
        %v1585 = vpop.f32.mrf.mxu0
        %v1586 = vadd.f32 0.0, %v1585
        %v1587 = vpop.f32.mrf.mxu0
        %v1588 = vadd.f32 0.0, %v1587
        %1589 = vmatprep.mubr.bf16.mxu0 0
        %1590 = vmatmul.mubr.bf16.gmra.mxu0 %v1503
        %v1591 = vpop.f32.mrf.mxu0
        %v1592 = vadd.f32 0.0, %v1591
        %v1593 = vpop.f32.mrf.mxu0
        %v1594 = vadd.f32 0.0, %v1593
        %v1595 = vpop.f32.mrf.mxu0
        %v1596 = vadd.f32 0.0, %v1595
        %v1597 = vpop.f32.mrf.mxu0
        %v1598 = vadd.f32 0.0, %v1597
        %1599 = vmatprep.mubr.bf16.mxu0 0
        %1600 = vmatmul.mubr.bf16.gmra.mxu0 %v1506
        %v1601 = vpop.f32.mrf.mxu0
        %v1602 = vadd.f32 0.0, %v1601
        %v1603 = vpop.f32.mrf.mxu0
        %v1604 = vadd.f32 0.0, %v1603
        %v1605 = vpop.f32.mrf.mxu0
        %v1606 = vadd.f32 0.0, %v1605
        %v1607 = vpop.f32.mrf.mxu0
        %v1608 = vadd.f32 0.0, %v1607
        %1609 = vmatprep.mubr.bf16.mxu0 0
        %1610 = vmatmul.mubr.bf16.gmra.mxu0 %v1509
        %v1611 = vpop.f32.mrf.mxu0
        %v1612 = vadd.f32 0.0, %v1611
        %v1613 = vpop.f32.mrf.mxu0
        %v1614 = vadd.f32 0.0, %v1613
        %v1615 = vpop.f32.mrf.mxu0
        %v1616 = vadd.f32 0.0, %v1615
        %v1617 = vpop.f32.mrf.mxu0
        %v1618 = vadd.f32 0.0, %v1617
        %1619 = vmatprep.mubr.bf16.mxu0 0
        %1620 = vmatmul.mubr.bf16.gmra.mxu0 %v1512
        %v1621 = vpop.f32.mrf.mxu0
        %v1622 = vadd.f32 0.0, %v1621
        %v1623 = vpop.f32.mrf.mxu0
        %v1624 = vadd.f32 0.0, %v1623
        %v1625 = vpop.f32.mrf.mxu0
        %v1626 = vadd.f32 0.0, %v1625
        %v1627 = vpop.f32.mrf.mxu0
        %v1628 = vadd.f32 0.0, %v1627
        %1629 = vmatprep.mubr.bf16.mxu0 0
        %1630 = vmatmul.mubr.bf16.gmra.mxu0 %v1515
        %v1631 = vpop.f32.mrf.mxu0
        %v1632 = vadd.f32 0.0, %v1631
        %v1633 = vpop.f32.mrf.mxu0
        %v1634 = vadd.f32 0.0, %v1633
        %v1635 = vpop.f32.mrf.mxu0
        %v1636 = vadd.f32 0.0, %v1635
        %v1637 = vpop.f32.mrf.mxu0
        %v1638 = vadd.f32 0.0, %v1637
        %1639 = vmatprep.mubr.bf16.mxu0 0
        %1640 = vmatmul.mubr.bf16.gmra.mxu0 %v1518
        %v1641 = vpop.f32.mrf.mxu0
        %v1642 = vadd.f32 0.0, %v1641
        %v1643 = vpop.f32.mrf.mxu0
        %v1644 = vadd.f32 0.0, %v1643
        %v1645 = vpop.f32.mrf.mxu0
        %v1646 = vadd.f32 0.0, %v1645
        %v1647 = vpop.f32.mrf.mxu0
        %v1648 = vadd.f32 0.0, %v1647
        %1649 = vmatprep.mubr.bf16.mxu0 0
        %1650 = vmatmul.mubr.bf16.gmra.mxu0 %v1521
        %v1651 = vpop.f32.mrf.mxu0
        %v1652 = vadd.f32 0.0, %v1651
        %v1653 = vpop.f32.mrf.mxu0
        %v1654 = vadd.f32 0.0, %v1653
        %v1655 = vpop.f32.mrf.mxu0
        %v1656 = vadd.f32 0.0, %v1655
        %v1657 = vpop.f32.mrf.mxu0
        %v1658 = vadd.f32 0.0, %v1657
        %1659 = vmatprep.mubr.bf16.mxu0 0
        %1660 = vmatmul.mubr.bf16.gmra.mxu0 %v1524
        %v1661 = vpop.f32.mrf.mxu0
        %v1662 = vadd.f32 0.0, %v1661
        %v1663 = vpop.f32.mrf.mxu0
        %v1664 = vadd.f32 0.0, %v1663
        %v1665 = vpop.f32.mrf.mxu0
        %v1666 = vadd.f32 0.0, %v1665
        %v1667 = vpop.f32.mrf.mxu0
        %v1668 = vadd.f32 0.0, %v1667
        %1669 = vmatprep.mubr.bf16.mxu0 0
        %1670 = vmatmul.mubr.bf16.gmra.mxu0 %v1527
        %v1671 = vpop.f32.mrf.mxu0
        %v1672 = vadd.f32 0.0, %v1671
        %v1673 = vpop.f32.mrf.mxu0
        %v1674 = vadd.f32 0.0, %v1673
        %v1675 = vpop.f32.mrf.mxu0
        %v1676 = vadd.f32 0.0, %v1675
        %v1677 = vpop.f32.mrf.mxu0
        %v1678 = vadd.f32 0.0, %v1677
        %1679 = vmatprep.mubr.bf16.mxu0 0
        %1680 = vmatmul.mubr.bf16.gmra.mxu0 %v1530
        %v1681 = vpop.f32.mrf.mxu0
        %v1682 = vadd.f32 0.0, %v1681
        %v1683 = vpop.f32.mrf.mxu0
        %v1684 = vadd.f32 0.0, %v1683
        %v1685 = vpop.f32.mrf.mxu0
        %v1686 = vadd.f32 0.0, %v1685
        %v1687 = vpop.f32.mrf.mxu0
        %v1688 = vadd.f32 0.0, %v1687
        %1689 = vmatprep.mubr.bf16.mxu0 0
        %1690 = vmatmul.mubr.bf16.gmra.mxu0 %v1533
        %v1691 = vpop.f32.mrf.mxu0
        %v1692 = vadd.f32 0.0, %v1691
        %v1693 = vpop.f32.mrf.mxu0
        %v1694 = vadd.f32 0.0, %v1693
        %v1695 = vpop.f32.mrf.mxu0
        %v1696 = vadd.f32 0.0, %v1695
        %v1697 = vpop.f32.mrf.mxu0
        %v1698 = vadd.f32 0.0, %v1697
        %1699 = vmatprep.mubr.bf16.mxu0 0
        %1700 = vmatmul.mubr.bf16.gmra.mxu0 %v1536
        %v1701 = vpop.f32.mrf.mxu0
        %v1702 = vadd.f32 0.0, %v1701
        %v1703 = vpop.f32.mrf.mxu0
        %v1704 = vadd.f32 0.0, %v1703
        %v1705 = vpop.f32.mrf.mxu0
        %v1706 = vadd.f32 0.0, %v1705
        %v1707 = vpop.f32.mrf.mxu0
        %v1708 = vadd.f32 0.0, %v1707
        %1709 = vmatprep.mubr.bf16.mxu0 0
        %1710 = vmatmul.mubr.bf16.gmra.mxu0 %v1539
        %v1711 = vpop.f32.mrf.mxu0
        %v1712 = vadd.f32 0.0, %v1711
        %v1713 = vpop.f32.mrf.mxu0
        %v1714 = vadd.f32 0.0, %v1713
        %v1715 = vpop.f32.mrf.mxu0
        %v1716 = vadd.f32 0.0, %v1715
        %v1717 = vpop.f32.mrf.mxu0
        %v1718 = vadd.f32 0.0, %v1717
        %1719 = vmatprep.mubr.bf16.mxu0 0
        %1720 = vmatmul.mubr.bf16.gmra.mxu0 %v1542
        %v1721 = vpop.f32.mrf.mxu0
        %v1722 = vadd.f32 0.0, %v1721
        %v1723 = vpop.f32.mrf.mxu0
        %v1724 = vadd.f32 0.0, %v1723
        %v1725 = vpop.f32.mrf.mxu0
        %v1726 = vadd.f32 0.0, %v1725
        %v1727 = vpop.f32.mrf.mxu0
        %v1728 = vadd.f32 0.0, %v1727
        %1729 = vmatprep.mubr.bf16.mxu0 0
        %1730 = vmatmul.mubr.bf16.gmra.mxu0 %v1545
        %v1731 = vpop.f32.mrf.mxu0
        %v1732 = vadd.f32 0.0, %v1731
        %v1733 = vpop.f32.mrf.mxu0
        %v1734 = vadd.f32 0.0, %v1733
        %v1735 = vpop.f32.mrf.mxu0
        %v1736 = vadd.f32 0.0, %v1735
        %v1737 = vpop.f32.mrf.mxu0
        %v1738 = vadd.f32 0.0, %v1737
        %1739 = vdwg.mxu0
        %v1740 = vmul.f32 %v1311, %v1582
        %v1741 = vmul.f32 %v1312, %v1584
        %v1742 = vmul.f32 %v1313, %v1586
        %v1743 = vmul.f32 %v1314, %v1588
        %v1744 = vmul.f32 %v1315, %v1592
        %v1745 = vmul.f32 %v1316, %v1594
        %v1746 = vmul.f32 %v1317, %v1596
        %v1747 = vmul.f32 %v1318, %v1598
        %v1748 = vmul.f32 %v1319, %v1602
        %v1749 = vmul.f32 %v1320, %v1604
        %v1750 = vmul.f32 %v1321, %v1606
        %v1751 = vmul.f32 %v1322, %v1608
        %v1752 = vmul.f32 %v1323, %v1612
        %v1753 = vmul.f32 %v1324, %v1614
        %v1754 = vmul.f32 %v1325, %v1616
        %v1755 = vmul.f32 %v1326, %v1618
        %v1756 = vmul.f32 %v1327, %v1622
        %v1757 = vmul.f32 %v1328, %v1624
        %v1758 = vmul.f32 %v1329, %v1626
        %v1759 = vmul.f32 %v1330, %v1628
        %v1760 = vmul.f32 %v1331, %v1632
        %v1761 = vmul.f32 %v1332, %v1634
        %v1762 = vmul.f32 %v1333, %v1636
        %v1763 = vmul.f32 %v1334, %v1638
        %v1764 = vmul.f32 %v1335, %v1642
        %v1765 = vmul.f32 %v1336, %v1644
        %v1766 = vmul.f32 %v1337, %v1646
        %v1767 = vmul.f32 %v1338, %v1648
        %v1768 = vmul.f32 %v1339, %v1652
        %v1769 = vmul.f32 %v1340, %v1654
        %v1770 = vmul.f32 %v1341, %v1656
        %v1771 = vmul.f32 %v1342, %v1658
        %v1772 = vmul.f32 %v1343, %v1662
        %v1773 = vmul.f32 %v1344, %v1664
        %v1774 = vmul.f32 %v1345, %v1666
        %v1775 = vmul.f32 %v1346, %v1668
        %v1776 = vmul.f32 %v1347, %v1672
        %v1777 = vmul.f32 %v1348, %v1674
        %v1778 = vmul.f32 %v1349, %v1676
        %v1779 = vmul.f32 %v1350, %v1678
        %v1780 = vmul.f32 %v1351, %v1682
        %v1781 = vmul.f32 %v1352, %v1684
        %v1782 = vmul.f32 %v1353, %v1686
        %v1783 = vmul.f32 %v1354, %v1688
        %v1784 = vmul.f32 %v1355, %v1692
        %v1785 = vmul.f32 %v1356, %v1694
        %v1786 = vmul.f32 %v1357, %v1696
        %v1787 = vmul.f32 %v1358, %v1698
        %v1788 = vmul.f32 %v1359, %v1702
        %v1789 = vmul.f32 %v1360, %v1704
        %v1790 = vmul.f32 %v1361, %v1706
        %v1791 = vmul.f32 %v1362, %v1708
        %v1792 = vmul.f32 %v1363, %v1712
        %v1793 = vmul.f32 %v1364, %v1714
        %v1794 = vmul.f32 %v1365, %v1716
        %v1795 = vmul.f32 %v1366, %v1718
        %v1796 = vmul.f32 %v1367, %v1722
        %v1797 = vmul.f32 %v1368, %v1724
        %v1798 = vmul.f32 %v1369, %v1726
        %v1799 = vmul.f32 %v1370, %v1728
        %v1800 = vmul.f32 %v1371, %v1732
        %v1801 = vmul.f32 %v1372, %v1734
        %v1802 = vmul.f32 %v1373, %v1736
        %v1803 = vmul.f32 %v1374, %v1738
        %v1804 = vpack.c.bf16 %v1742, %v1740
        %v1805 = vpack.c.bf16 %v1743, %v1741
        %v1806 = vpack.c.bf16 %v1746, %v1744
        %v1807 = vpack.c.bf16 %v1747, %v1745
        %v1808 = vpack.c.bf16 %v1750, %v1748
        %v1809 = vpack.c.bf16 %v1751, %v1749
        %v1810 = vpack.c.bf16 %v1754, %v1752
        %v1811 = vpack.c.bf16 %v1755, %v1753
        %v1812 = vpack.c.bf16 %v1758, %v1756
        %v1813 = vpack.c.bf16 %v1759, %v1757
        %v1814 = vpack.c.bf16 %v1762, %v1760
        %v1815 = vpack.c.bf16 %v1763, %v1761
        %v1816 = vpack.c.bf16 %v1766, %v1764
        %v1817 = vpack.c.bf16 %v1767, %v1765
        %v1818 = vpack.c.bf16 %v1770, %v1768
        %v1819 = vpack.c.bf16 %v1771, %v1769
        %v1820 = vpack.c.bf16 %v1774, %v1772
        %v1821 = vpack.c.bf16 %v1775, %v1773
        %v1822 = vpack.c.bf16 %v1778, %v1776
        %v1823 = vpack.c.bf16 %v1779, %v1777
        %v1824 = vpack.c.bf16 %v1782, %v1780
        %v1825 = vpack.c.bf16 %v1783, %v1781
        %v1826 = vpack.c.bf16 %v1786, %v1784
        %v1827 = vpack.c.bf16 %v1787, %v1785
        %v1828 = vpack.c.bf16 %v1790, %v1788
        %v1829 = vpack.c.bf16 %v1791, %v1789
        %v1830 = vpack.c.bf16 %v1794, %v1792
        %v1831 = vpack.c.bf16 %v1795, %v1793
        %v1832 = vpack.c.bf16 %v1798, %v1796
        %v1833 = vpack.c.bf16 %v1799, %v1797
        %v1834 = vpack.c.bf16 %v1802, %v1800
        %v1835 = vpack.c.bf16 %v1803, %v1801
        %v1836 = vld [vmem:[%s9] sm:$0xff]
        %v1837 = vld [vmem:[%s9 + $0x8] sm:$0xff]
        %v1840 = vunpack.c.l.b16 %v1836
        %v1841 = vunpack.c.h.b16 %v1836
        %v1842 = vunpack.c.l.b16 %v1837
        %v1843 = vunpack.c.h.b16 %v1837
        %v1844 = vpack.c.b16 %v1842, %v1840
        %v1845 = vpack.c.b16 %v1843, %v1841
        %1848 = vmatprep.subr.bf16.mxu0 %v1819
        %1849 = vmatpush1.bf16.msra.mxu0 %v1818
        %1850 = vmatprep.subr.bf16.mxu0 %v1817
        %1851 = vmatpush1.bf16.msra.mxu0 %v1816
        %1852 = vmatprep.subr.bf16.mxu0 %v1815
        %1853 = vmatpush1.bf16.msra.mxu0 %v1814
        %1854 = vmatprep.subr.bf16.mxu0 %v1813
        %1855 = vmatpush1.bf16.msra.mxu0 %v1812
        %1856 = vmatprep.subr.bf16.mxu0 %v1811
        %1857 = vmatpush1.bf16.msra.mxu0 %v1810
        %1858 = vmatprep.subr.bf16.mxu0 %v1809
        %1859 = vmatpush1.bf16.msra.mxu0 %v1808
        %1860 = vmatprep.subr.bf16.mxu0 %v1807
        %1861 = vmatpush1.bf16.msra.mxu0 %v1806
        %1862 = vmatprep.subr.bf16.mxu0 %v1805
        %1863 = vmatpush1.bf16.msra.mxu0 %v1804
        %1864 = vmatprep.subr.bf16.mxu0 %v1835
        %1865 = vmatpush2.bf16.msra.mxu0 %v1834
        %1866 = vmatprep.subr.bf16.mxu0 %v1833
        %1867 = vmatpush2.bf16.msra.mxu0 %v1832
        %1868 = vmatprep.subr.bf16.mxu0 %v1831
        %1869 = vmatpush2.bf16.msra.mxu0 %v1830
        %1870 = vmatprep.subr.bf16.mxu0 %v1829
        %1871 = vmatpush2.bf16.msra.mxu0 %v1828
        %1872 = vmatprep.subr.bf16.mxu0 %v1827
        %1873 = vmatpush2.bf16.msra.mxu0 %v1826
        %1874 = vmatprep.subr.bf16.mxu0 %v1825
        %1875 = vmatpush2.bf16.msra.mxu0 %v1824
        %1876 = vmatprep.subr.bf16.mxu0 %v1823
        %1877 = vmatpush2.bf16.msra.mxu0 %v1822
        %1878 = vmatprep.subr.bf16.mxu0 %v1821
        %1879 = vmatpush2.bf16.msra.mxu0 %v1820
        %1880 = vmatprep.mubr.bf16.mxu0 %v1845
        %1881 = vmatmul.mubr.bf16.gmra.mxu0 %v1844
        %v1882 = vpop.f32.mrf.mxu0
        %v1883 = vadd.f32 0.0, %v1882
        %v1884 = vpop.f32.mrf.mxu0
        %v1885 = vadd.f32 0.0, %v1884
        %v1886 = vpop.f32.mrf.mxu0
        %v1887 = vadd.f32 0.0, %v1886
        %v1888 = vpop.f32.mrf.mxu0
        %v1889 = vadd.f32 0.0, %v1888
        %1890 = vdwg.mxu0
        %v1891 = vld [vmem:[%s10] sm:$0xf]
        %v1892 = vld [vmem:[%s10 + $0x4] sm:$0xf]
        %v1893 = vpack.c.bf16 %v1887, %v1883
        %v1894 = vpack.c.bf16 %v1889, %v1885
        %v1897 = vunpack.c.l.b16 %v1891
        %v1898 = vunpack.c.l.b16 %v1892
        %v1899 = vpack.c.b16 %v1898, %v1897
        %v1901 = vsel %vm582, %v1899, 0
        %1903 = vmatprep.subr.bf16.mxu0 0
        %1904 = vmatpush1.bf16.msra.mxu0 0
        %1905 = vmatprep.subr.bf16.mxu0 0
        %1906 = vmatpush1.bf16.msra.mxu0 0
        %1907 = vmatprep.subr.bf16.mxu0 0
        %1908 = vmatpush1.bf16.msra.mxu0 0
        %1909 = vmatprep.subr.bf16.mxu0 0
        %1910 = vmatpush1.bf16.msra.mxu0 0
        %1911 = vmatprep.subr.bf16.mxu0 0
        %1912 = vmatpush1.bf16.msra.mxu0 0
        %1913 = vmatprep.subr.bf16.mxu0 0
        %1914 = vmatpush1.bf16.msra.mxu0 0
        %1915 = vmatprep.subr.bf16.mxu0 0
        %1916 = vmatpush1.bf16.msra.mxu0 0
        %1917 = vmatprep.subr.bf16.mxu0 %v1894
        %1918 = vmatpush1.bf16.msra.mxu0 %v1893
        %1919 = vmatprep.subr.bf16.mxu0 0
        %1920 = vmatpush2.bf16.msra.mxu0 0
        %1921 = vmatprep.subr.bf16.mxu0 0
        %1922 = vmatpush2.bf16.msra.mxu0 0
        %1923 = vmatprep.subr.bf16.mxu0 0
        %1924 = vmatpush2.bf16.msra.mxu0 0
        %1925 = vmatprep.subr.bf16.mxu0 0
        %1926 = vmatpush2.bf16.msra.mxu0 0
        %1927 = vmatprep.subr.bf16.mxu0 0
        %1928 = vmatpush2.bf16.msra.mxu0 0
        %1929 = vmatprep.subr.bf16.mxu0 0
        %1930 = vmatpush2.bf16.msra.mxu0 0
        %1931 = vmatprep.subr.bf16.mxu0 0
        %1932 = vmatpush2.bf16.msra.mxu0 0
        %1933 = vmatprep.subr.bf16.mxu0 0
        %1934 = vmatpush2.bf16.msra.mxu0 0
        %1935 = vmatprep.mubr.bf16.mxu0 0
        %1936 = vmatmul.mubr.bf16.gmra.mxu0 %v1901
        %v1937 = vpop.f32.mrf.mxu0
        %v1938 = vadd.f32 0.0, %v1937
        %v1939 = vpop.f32.mrf.mxu0
        %v1940 = vadd.f32 0.0, %v1939
        %v1941 = vpop.f32.mrf.mxu0
        %v1942 = vadd.f32 0.0, %v1941
        %v1943 = vpop.f32.mrf.mxu0
        %v1944 = vadd.f32 0.0, %v1943
        %1945 = vdwg.mxu0
        %v1946 = vtanh.pop %v1938
        %v1947 = vtanh.pop %v1940
        %v1948 = vtanh.pop %v1942
        %v1949 = vtanh.pop %v1944
        %1950 = vst [vmem:[%s544] sm:$0xff] %v1946
        %1951 = vst [vmem:[%s544 + $0x8] sm:$0xff] %v1947
        %1952 = vst [vmem:[%s544 + $0x10] sm:$0xff] %v1948
        %1953 = vst [vmem:[%s544 + $0x18] sm:$0xff] %v1949
        %s1954 = sand.u32 %s279, 1
        %s1955 = scalar_lea.sflag [#allocation6], %s1954
        %s1956 = sand.u32 %s279, 1
        %s1957 = smul.addr %s1956, 32
        %s1958 = scalar_lea.vmem [#allocation5], %s1957
        // Predicated region
        $region179: #{tpu_custom_call.1} parent=165 // pred_check
          %p1959 = pneg %p289
        $region180: #{tpu_custom_call.1} parent=165 // pred_check_branch
          %1961 = sbr.rel (%p1959) target = $region182
        $region181: #{tpu_custom_call.1} parent=165 // pred_region
          %s1962 = smul.u32 2, %s25
          %s1964 = ssub.s32 512, 512
          %1965 = vsyncadd %s1955, %s1964
          %s1966 = smul.addr %s1962, 128
          %s1967 = scalar_lea.hbm %s11, %s1966
          %s1968 = sshll.u32 %s1958, 4
          %s1969 = int_to_ptr.vmem [resolvable:$true] %s1968
          %1974 = dma.vmem_to_hbm [thread:$0]  %s1969, 512, %s1967, %s1955, 256, 1024, 16
        $region182: #{tpu_custom_call.1} parent=165 // pred_fallthru
          _
      $region166: #{tpu_custom_call.1} parent=5 // pred_fallthru
        _
      %p1975 = scmp.le.s32.totalorder 2, %s20
      // Predicated region
      $region183: #{tpu_custom_call.1} parent=5 // pred_check
        %p1976 = pneg %p1975
      $region184: #{tpu_custom_call.1} parent=5 // pred_check_branch
        %1978 = sbr.rel (%p1976) target = $region186
      $region185: #{tpu_custom_call.1} parent=5 // pred_region
        %s1979 = ssub.s32 %s20, 2
        // Predicated region
        $region187: #{tpu_custom_call.1} parent=185 // pred_check
          %p1980 = pneg %p295
        $region188: #{tpu_custom_call.1} parent=185 // pred_check_branch
          %1982 = sbr.rel (%p1980) target = $region190
        $region189: #{tpu_custom_call.1} parent=185 // pred_region
          %s1983 = sand.u32 %s280, 1
          %s1984 = scalar_lea.sflag [#allocation6], %s1983
          %s1985 = sand.u32 %s280, 1
          %s1986 = smul.addr %s1985, 32
          %s1987 = scalar_lea.vmem [#allocation5], %s1986
          %1988 = dma.done %s1984, 512
        $region190: #{tpu_custom_call.1} parent=185 // pred_fallthru
          _
      $region186: #{tpu_custom_call.1} parent=5 // pred_fallthru
        _
    $region6: #{tpu_custom_call.1} parent=1 // loop_footer
      %s24 = sadd.s32 1, %s20
    $region7: #{tpu_custom_call.1} parent=1 // loop_footer_branch
      %19 = sbr.rel target = $region3
    $region8: #{tpu_custom_call.1} parent=1 // loop_exit
      _
    %1989 = vsyncpa [#allocation6], 1
    %s1990 = scalar_lea.sflag [#allocation6], 1
    %1991 = vsyncpa %s1990, 1

</llo_original>
